<compile_context>
chip_gen: v7x
topology: tpu7x:2x2x1
jax: 0.10.0
libtpu: 0.0.40
codegen_flags: <defaults>
</compile_context>

<pallas_src>
import functools

import jax
import jax.numpy as jnp
from jax.experimental import pallas as pl
from jax.experimental.pallas import tpu as pltpu


def _svd_lstm_fused_kernel(T, B, H, L,
                           x_ref, h0_ref, c0_ref, win_ref, whid_ref, b_ref,
                           outh_ref, outc_ref):
    """Fused multi-layer SVD-LSTM: whole sequence + all layers in one invocation.

    Packed-lane layout: every per-step vector is a (B, 4H) tile whose lanes hold the four
    gate blocks [in | remember | cell | out].  The hidden and cell states live in gate
    block 1 (lanes [H, 2H)); the other blocks carry bounded don't-care values that are
    annihilated exactly by zero rows in the padded weight matrices.
    """
    G = 4 * H

    # Lane-id mask selecting the cell-gate (tanh) block; hoisted out of all loops.
    lane = jax.lax.broadcasted_iota(jnp.int32, (B, G), 1)
    is_cell = jnp.logical_and(lane >= 2 * H, lane < 3 * H)

    h0 = h0_ref[...]                  # (B, G), valid state packed in block 1
    c0 = c0_ref[...]
    y_seq = x_ref[...]                # (T*B, G) packed input sequence of the current layer
    c = c0

    for layer in range(L):            # static unroll over layers (weights stay VMEM-resident)
        w_in = win_ref[layer]         # (G, G) input  -> gates (zero-padded rows)
        w_h = whid_ref[layer]         # (G, G) hidden -> gates (zero-padded rows)
        bias = b_ref[layer]           # (1, G)

        # Hoisted input projection + bias for the whole sequence: one well-filled MXU
        # matmul that is independent of the recurrence.
        xp = jnp.dot(y_seq, w_in, preferred_element_type=jnp.float32) + bias  # (T*B, G)

        h = h0
        c = c0
        for t in range(T):            # fully unrolled recurrence (T is static & tiny)
            gates = xp[t * B:(t + 1) * B, :] + jnp.dot(
                h, w_h, preferred_element_type=jnp.float32)          # (B, G)

            # Full-vreg nonlinearities (EUP): tanh on the cell block, sigmoid elsewhere.
            acts = jnp.where(is_cell, jnp.tanh(gates), jax.nn.sigmoid(gates))

            # Gate alignment with XLU rotations only.  a2 swaps block pairs (shift 2H is
            # direction-agnostic); p = acts * a2 is 2H-periodic, so the H-shift below lands
            # sigmoid(in)*tanh(cell) in block 1 regardless of the rotation convention.
            a2 = pltpu.roll(acts, 2 * H, axis=1)    # [tanh(g) | s(o) | s(i) | s(r)]
            p = acts * a2                           # blocks {0,2}: s(i)*tanh(g)
            c = acts * c + pltpu.roll(p, H, axis=1)  # block 1: s(r)*c + s(i)*tanh(g)
            h = jnp.tanh(c) * a2                     # block 1: s(o)*tanh(c_new)

            # Lane-dense (128-wide) store of the packed hidden state for this step.
            outh_ref[t * B:(t + 1) * B, :] = h

        if layer + 1 < L:
            # The just-written packed hidden sequence is the next layer's input.
            y_seq = outh_ref[...]

    outc_ref[...] = c                 # last layer, last step cell state (packed)


def _pad_rows(w, total_rows, row_offset):
    """Place `w` at rows [row_offset, row_offset+rows(w)) of a (total_rows, cols) zero matrix."""
    out = jnp.zeros((total_rows, w.shape[1]), jnp.float32)
    return out.at[row_offset:row_offset + w.shape[0]].set(w.astype(jnp.float32))


def svd_lstm_forward(x, params, hidden=None):
    """Multi-layer SVD_LSTM forward (dropout = identity).

    x       : (T, B, input_size) float32
    params  : list of per-layer dicts {U, S, V, b, hidden_size}
    hidden  : None (zeros) or (h0, c0) each (B, H); like the PyTorch module, the same
              (h0, c0) seeds every layer at s == 0.
    returns (outputs, (y, new_c)) matching the PyTorch forward.
    """
    T, B, in_dim = x.shape
    L = len(params)
    H = params[0]["hidden_size"]
    G = 4 * H
    assert all(p["hidden_size"] == H for p in params), "fused kernel assumes uniform hidden size"
    assert in_dim <= G, "input feature dim must fit inside the 4H packed lane block"

    # Pre-fold W = U @ diag(|S|) @ V once per layer, split into x/h parts, and zero-row pad
    # to a uniform lane-dense (4H, 4H) layout.  (In production this would be done once.)
    w_in_list, w_h_list, b_list = [], [], []
    d = in_dim
    for layer, p in enumerate(params):
        W = (p["U"].astype(jnp.float32)
             * jnp.abs(p["S"].astype(jnp.float32))[None, :]) @ p["V"].astype(jnp.float32)
        Wx, Wh = W[:d], W[d:]                      # (d, 4H), (H, 4H)
        # Layer 0 consumes x packed at lanes [0, in_dim); deeper layers consume the packed
        # hidden state living at lanes [H, 2H).
        row_off = 0 if layer == 0 else H
        w_in_list.append(_pad_rows(Wx, G, row_off))
        w_h_list.append(_pad_rows(Wh, G, H))
        b_list.append(p["b"].reshape(1, G).astype(jnp.float32))
        d = H
    w_in_all = jnp.stack(w_in_list)                # (L, G, G)
    w_h_all = jnp.stack(w_h_list)                  # (L, G, G)
    b_all = jnp.stack(b_list)                      # (L, 1, G)

    # Pack x: (T, B, in_dim) -> (T*B, G) with features at lanes [0, in_dim), zeros elsewhere.
    x_packed = jnp.zeros((T * B, G), jnp.float32).at[:, :in_dim].set(
        x.reshape(T * B, in_dim).astype(jnp.float32))

    # Pack initial state into gate block 1 (zeros when hidden is None).
    h0p = jnp.zeros((B, G), jnp.float32)
    c0p = jnp.zeros((B, G), jnp.float32)
    if hidden is not None:
        h0, c0 = hidden
        h0p = h0p.at[:, H:2 * H].set(h0.astype(jnp.float32))
        c0p = c0p.at[:, H:2 * H].set(c0.astype(jnp.float32))

    kernel = functools.partial(_svd_lstm_fused_kernel, T, B, H, L)
    vmem = pl.BlockSpec(memory_space=pltpu.MemorySpace.VMEM)   # whole array resident in VMEM

    outh, outc = pl.pallas_call(
        kernel,
        out_shape=(jax.ShapeDtypeStruct((T * B, G), jnp.float32),   # packed h sequence
                   jax.ShapeDtypeStruct((B, G), jnp.float32)),      # packed final cell
        in_specs=[vmem] * 6,
        out_specs=(vmem, vmem),
    )(x_packed, h0p, c0p, w_in_all, w_h_all, b_all)

    outputs = outh[:, H:2 * H].reshape(T, B, H)
    final_state = (outputs[-1], outc[:, H:2 * H])   # (y, new_c) of last step / last layer
    return outputs, final_state


# ------------------------- deterministic parameter init -------------------------

def xavier_normal(key, shape):
    fan_in, fan_out = shape
    std = (2.0 / (fan_in + fan_out)) ** 0.5
    return std * jax.random.normal(key, shape, dtype=jnp.float32)


def init_svd_lstm_params(key, input_size, hidden_size, num_layers):
    params = []
    in_dim = input_size
    for _ in range(num_layers):
        H = hidden_size
        r = min(in_dim + H, 4 * H)
        key, ku, kv, ks = jax.random.split(key, 4)
        params.append(dict(
            U=xavier_normal(ku, (in_dim + H, r)),
            V=xavier_normal(kv, (r, 4 * H)),
            S=jax.random.uniform(ks, (r,), dtype=jnp.float32),
            b=jnp.zeros((4 * H,), jnp.float32),
            hidden_size=H,
        ))
        in_dim = H
    return params


# ------------------------------- pure-JAX reference ------------------------------

def reference_forward(x, params, hidden=None):
    T, B, _ = x.shape
    y = x
    c_seq = None
    for p in params:
        H = p["hidden_size"]
        if hidden is None:
            h = jnp.zeros((B, H), jnp.float32)
            c = jnp.zeros((B, H), jnp.float32)
        else:
            h, c = hidden
            h = h.astype(jnp.float32)
            c = c.astype(jnp.float32)
        W = p["U"] @ jnp.diag(jnp.abs(p["S"])) @ p["V"]
        outs_h, outs_c = [], []
        for t in range(T):
            stacked = jnp.concatenate([y[t], h], axis=1)
            gates = stacked @ W + p["b"]
            i_g = jax.nn.sigmoid(gates[:, 0:H])
            r_g = jax.nn.sigmoid(gates[:, H:2 * H])
            c_g = jnp.tanh(gates[:, 2 * H:3 * H])
            o_g = jax.nn.sigmoid(gates[:, 3 * H:4 * H])
            c = r_g * c + i_g * c_g
            h = o_g * jnp.tanh(c)
            outs_h.append(h)
            outs_c.append(c)
        y = jnp.stack(outs_h)
        c_seq = jnp.stack(outs_c)
    return y, (y[-1], c_seq[-1])


if __name__ == "__main__":
    # Small shapes implied by the module: seq=8, batch=2, input=16, hidden=32, layers=2.
    T, B, INPUT, HIDDEN, LAYERS = 8, 2, 16, 32, 2

    key = jax.random.PRNGKey(0)
    key, kx, kh, kc = jax.random.split(key, 4)
    x = jax.random.normal(kx, (T, B, INPUT), dtype=jnp.float32)
    params = init_svd_lstm_params(key, INPUT, HIDDEN, LAYERS)

    # --- hidden=None path (zeros init, as in the PyTorch cell when no state is given) ---
    outputs, (h_last, c_last) = svd_lstm_forward(x, params, hidden=None)
    jax.block_until_ready(outputs)
    jax.block_until_ready(h_last)
    jax.block_until_ready(c_last)

    ref_out, (ref_h, ref_c) = reference_forward(x, params, hidden=None)
    assert outputs.shape == (T, B, HIDDEN)
    assert jnp.allclose(outputs, ref_out, atol=1e-5, rtol=1e-5)
    assert jnp.allclose(h_last, ref_h, atol=1e-5, rtol=1e-5)
    assert jnp.allclose(c_last, ref_c, atol=1e-5, rtol=1e-5)

    # --- explicit initial state path (same (h0, c0) feeds every layer at s == 0) ---
    h0 = 0.1 * jax.random.normal(kh, (B, HIDDEN), dtype=jnp.float32)
    c0 = 0.1 * jax.random.normal(kc, (B, HIDDEN), dtype=jnp.float32)
    outputs2, (h2, c2) = svd_lstm_forward(x, params, hidden=(h0, c0))
    jax.block_until_ready(outputs2)
    ref_out2, (ref_h2, ref_c2) = reference_forward(x, params, hidden=(h0, c0))
    assert jnp.allclose(outputs2, ref_out2, atol=1e-5, rtol=1e-5)
    assert jnp.allclose(h2, ref_h2, atol=1e-5, rtol=1e-5)
    assert jnp.allclose(c2, ref_c2, atol=1e-5, rtol=1e-5)

    print("KERNEL_OK")
</pallas_src>

<mosaic_0001>
module attributes {stable_mosaic.version = 11 : i64} {
  func.func @_svd_lstm_fused_kernel(%arg0: memref<16x128xf32, #tpu.memory_space<vmem>>, %arg1: memref<2x128xf32, #tpu.memory_space<vmem>>, %arg2: memref<2x128xf32, #tpu.memory_space<vmem>>, %arg3: memref<2x128x128xf32, #tpu.memory_space<vmem>>, %arg4: memref<2x128x128xf32, #tpu.memory_space<vmem>>, %arg5: memref<2x1x128xf32, #tpu.memory_space<vmem>>, %arg6: memref<16x128xf32, #tpu.memory_space<vmem>>, %arg7: memref<2x128xf32, #tpu.memory_space<vmem>>) attributes {dimension_semantics = [], scalar_prefetch = 0 : i64, scratch_operands = 0 : i64, tpu.core_type = #tpu.core_type<tc>} {
    %0 = tpu.iota {dimensions = array<i32: 1>} : vector<2x128xi32>
    %c64_i32 = arith.constant 64 : i32
    %1 = vector.broadcast %c64_i32 : i32 to vector<2x128xi32>
    %2 = arith.cmpi sge, %0, %1 : vector<2x128xi32>
    %c96_i32 = arith.constant 96 : i32
    %3 = vector.broadcast %c96_i32 : i32 to vector<2x128xi32>
    %4 = arith.cmpi slt, %0, %3 : vector<2x128xi32>
    %5 = arith.andi %2, %4 : vector<2x128xi1>
    %c0 = arith.constant 0 : index
    %c0_0 = arith.constant 0 : index
    %6 = vector.load %arg1[%c0, %c0_0] : memref<2x128xf32, #tpu.memory_space<vmem>>, vector<2x128xf32>
    %c0_1 = arith.constant 0 : index
    %c0_2 = arith.constant 0 : index
    %7 = vector.load %arg2[%c0_1, %c0_2] : memref<2x128xf32, #tpu.memory_space<vmem>>, vector<2x128xf32>
    %c0_3 = arith.constant 0 : index
    %c0_4 = arith.constant 0 : index
    %8 = vector.load %arg0[%c0_3, %c0_4] : memref<16x128xf32, #tpu.memory_space<vmem>>, vector<16x128xf32>
    %c0_5 = arith.constant 0 : index
    %c0_6 = arith.constant 0 : index
    %c0_7 = arith.constant 0 : index
    %9 = vector.load %arg3[%c0_5, %c0_6, %c0_7] : memref<2x128x128xf32, #tpu.memory_space<vmem>>, vector<1x128x128xf32>
    %10 = vector.shape_cast %9 : vector<1x128x128xf32> to vector<128x128xf32>
    %c0_8 = arith.constant 0 : index
    %c0_9 = arith.constant 0 : index
    %c0_10 = arith.constant 0 : index
    %11 = vector.load %arg4[%c0_8, %c0_9, %c0_10] : memref<2x128x128xf32, #tpu.memory_space<vmem>>, vector<1x128x128xf32>
    %12 = vector.shape_cast %11 : vector<1x128x128xf32> to vector<128x128xf32>
    %c0_11 = arith.constant 0 : index
    %c0_12 = arith.constant 0 : index
    %c0_13 = arith.constant 0 : index
    %13 = vector.load %arg5[%c0_11, %c0_12, %c0_13] : memref<2x1x128xf32, #tpu.memory_space<vmem>>, vector<1x1x128xf32>
    %14 = vector.shape_cast %13 : vector<1x1x128xf32> to vector<1x128xf32>
    %cst = arith.constant dense<0.000000e+00> : vector<16x128xf32>
    %15 = tpu.matmul %8, %10, %cst {dimension_numbers = #tpu.dot_dimension_numbers<[1], [0], [0], [1], [0, 0, 1, 1], [], []>} : vector<16x128xf32>, vector<128x128xf32>, vector<16x128xf32> -> vector<16x128xf32>
    %16 = vector.broadcast %14 : vector<1x128xf32> to vector<16x128xf32>
    %17 = arith.addf %15, %16 : vector<16x128xf32>
    %18 = vector.extract_strided_slice %17 {offsets = [0, 0], sizes = [2, 128], strides = [1, 1]} : vector<16x128xf32> to vector<2x128xf32>
    %cst_14 = arith.constant dense<0.000000e+00> : vector<2x128xf32>
    %19 = tpu.matmul %6, %12, %cst_14 {dimension_numbers = #tpu.dot_dimension_numbers<[1], [0], [0], [1], [0, 0, 1, 1], [], []>} : vector<2x128xf32>, vector<128x128xf32>, vector<2x128xf32> -> vector<2x128xf32>
    %20 = arith.addf %18, %19 : vector<2x128xf32>
    %21 = math.tanh %20 : vector<2x128xf32>
    %22 = arith.negf %20 : vector<2x128xf32>
    %23 = math.exp %22 : vector<2x128xf32>
    %cst_15 = arith.constant 1.000000e+00 : f32
    %24 = vector.broadcast %cst_15 : f32 to vector<2x128xf32>
    %25 = arith.addf %24, %23 : vector<2x128xf32>
    %26 = arith.divf %24, %25 : vector<2x128xf32>
    %27 = arith.select %5, %21, %26 : vector<2x128xi1>, vector<2x128xf32>
    %c64_i32_16 = arith.constant 64 : i32
    %28 = tpu.dynamic_rotate %27 by %c64_i32_16 dim 1 : vector<2x128xf32>, i32 -> vector<2x128xf32>
    %29 = arith.mulf %27, %28 : vector<2x128xf32>
    %30 = arith.mulf %27, %7 : vector<2x128xf32>
    %c32_i32 = arith.constant 32 : i32
    %31 = tpu.dynamic_rotate %29 by %c32_i32 dim 1 : vector<2x128xf32>, i32 -> vector<2x128xf32>
    %32 = arith.addf %30, %31 : vector<2x128xf32>
    %33 = math.tanh %32 : vector<2x128xf32>
    %34 = arith.mulf %33, %28 : vector<2x128xf32>
    %c0_17 = arith.constant 0 : index
    %c0_18 = arith.constant 0 : index
    %35 = vector.load %arg6[%c0_17, %c0_18] : memref<16x128xf32, #tpu.memory_space<vmem>>, vector<2x128xf32>
    tpu.vector_store %arg6[%c0_17, %c0_18], %34 {strides = array<i32>} : memref<16x128xf32, #tpu.memory_space<vmem>>, vector<2x128xf32>,
    %36 = vector.extract_strided_slice %17 {offsets = [2, 0], sizes = [2, 128], strides = [1, 1]} : vector<16x128xf32> to vector<2x128xf32>
    %cst_19 = arith.constant dense<0.000000e+00> : vector<2x128xf32>
    %37 = tpu.matmul %34, %12, %cst_19 {dimension_numbers = #tpu.dot_dimension_numbers<[1], [0], [0], [1], [0, 0, 1, 1], [], []>} : vector<2x128xf32>, vector<128x128xf32>, vector<2x128xf32> -> vector<2x128xf32>
    %38 = arith.addf %36, %37 : vector<2x128xf32>
    %39 = math.tanh %38 : vector<2x128xf32>
    %40 = arith.negf %38 : vector<2x128xf32>
    %41 = math.exp %40 : vector<2x128xf32>
    %cst_20 = arith.constant 1.000000e+00 : f32
    %42 = vector.broadcast %cst_20 : f32 to vector<2x128xf32>
    %43 = arith.addf %42, %41 : vector<2x128xf32>
    %44 = arith.divf %42, %43 : vector<2x128xf32>
    %45 = arith.select %5, %39, %44 : vector<2x128xi1>, vector<2x128xf32>
    %c64_i32_21 = arith.constant 64 : i32
    %46 = tpu.dynamic_rotate %45 by %c64_i32_21 dim 1 : vector<2x128xf32>, i32 -> vector<2x128xf32>
    %47 = arith.mulf %45, %46 : vector<2x128xf32>
    %48 = arith.mulf %45, %32 : vector<2x128xf32>
    %c32_i32_22 = arith.constant 32 : i32
    %49 = tpu.dynamic_rotate %47 by %c32_i32_22 dim 1 : vector<2x128xf32>, i32 -> vector<2x128xf32>
    %50 = arith.addf %48, %49 : vector<2x128xf32>
    %51 = math.tanh %50 : vector<2x128xf32>
    %52 = arith.mulf %51, %46 : vector<2x128xf32>
    %c2 = arith.constant 2 : index
    %c0_23 = arith.constant 0 : index
    %53 = vector.load %arg6[%c2, %c0_23] : memref<16x128xf32, #tpu.memory_space<vmem>>, vector<2x128xf32>
    tpu.vector_store %arg6[%c2, %c0_23], %52 {strides = array<i32>} : memref<16x128xf32, #tpu.memory_space<vmem>>, vector<2x128xf32>,
    %54 = vector.extract_strided_slice %17 {offsets = [4, 0], sizes = [2, 128], strides = [1, 1]} : vector<16x128xf32> to vector<2x128xf32>
    %cst_24 = arith.constant dense<0.000000e+00> : vector<2x128xf32>
    %55 = tpu.matmul %52, %12, %cst_24 {dimension_numbers = #tpu.dot_dimension_numbers<[1], [0], [0], [1], [0, 0, 1, 1], [], []>} : vector<2x128xf32>, vector<128x128xf32>, vector<2x128xf32> -> vector<2x128xf32>
    %56 = arith.addf %54, %55 : vector<2x128xf32>
    %57 = math.tanh %56 : vector<2x128xf32>
    %58 = arith.negf %56 : vector<2x128xf32>
    %59 = math.exp %58 : vector<2x128xf32>
    %cst_25 = arith.constant 1.000000e+00 : f32
    %60 = vector.broadcast %cst_25 : f32 to vector<2x128xf32>
    %61 = arith.addf %60, %59 : vector<2x128xf32>
    %62 = arith.divf %60, %61 : vector<2x128xf32>
    %63 = arith.select %5, %57, %62 : vector<2x128xi1>, vector<2x128xf32>
    %c64_i32_26 = arith.constant 64 : i32
    %64 = tpu.dynamic_rotate %63 by %c64_i32_26 dim 1 : vector<2x128xf32>, i32 -> vector<2x128xf32>
    %65 = arith.mulf %63, %64 : vector<2x128xf32>
    %66 = arith.mulf %63, %50 : vector<2x128xf32>
    %c32_i32_27 = arith.constant 32 : i32
    %67 = tpu.dynamic_rotate %65 by %c32_i32_27 dim 1 : vector<2x128xf32>, i32 -> vector<2x128xf32>
    %68 = arith.addf %66, %67 : vector<2x128xf32>
    %69 = math.tanh %68 : vector<2x128xf32>
    %70 = arith.mulf %69, %64 : vector<2x128xf32>
    %c4 = arith.constant 4 : index
    %c0_28 = arith.constant 0 : index
    %71 = vector.load %arg6[%c4, %c0_28] : memref<16x128xf32, #tpu.memory_space<vmem>>, vector<2x128xf32>
    tpu.vector_store %arg6[%c4, %c0_28], %70 {strides = array<i32>} : memref<16x128xf32, #tpu.memory_space<vmem>>, vector<2x128xf32>,
    %72 = vector.extract_strided_slice %17 {offsets = [6, 0], sizes = [2, 128], strides = [1, 1]} : vector<16x128xf32> to vector<2x128xf32>
    %cst_29 = arith.constant dense<0.000000e+00> : vector<2x128xf32>
    %73 = tpu.matmul %70, %12, %cst_29 {dimension_numbers = #tpu.dot_dimension_numbers<[1], [0], [0], [1], [0, 0, 1, 1], [], []>} : vector<2x128xf32>, vector<128x128xf32>, vector<2x128xf32> -> vector<2x128xf32>
    %74 = arith.addf %72, %73 : vector<2x128xf32>
    %75 = math.tanh %74 : vector<2x128xf32>
    %76 = arith.negf %74 : vector<2x128xf32>
    %77 = math.exp %76 : vector<2x128xf32>
    %cst_30 = arith.constant 1.000000e+00 : f32
    %78 = vector.broadcast %cst_30 : f32 to vector<2x128xf32>
    %79 = arith.addf %78, %77 : vector<2x128xf32>
    %80 = arith.divf %78, %79 : vector<2x128xf32>
    %81 = arith.select %5, %75, %80 : vector<2x128xi1>, vector<2x128xf32>
    %c64_i32_31 = arith.constant 64 : i32
    %82 = tpu.dynamic_rotate %81 by %c64_i32_31 dim 1 : vector<2x128xf32>, i32 -> vector<2x128xf32>
    %83 = arith.mulf %81, %82 : vector<2x128xf32>
    %84 = arith.mulf %81, %68 : vector<2x128xf32>
    %c32_i32_32 = arith.constant 32 : i32
    %85 = tpu.dynamic_rotate %83 by %c32_i32_32 dim 1 : vector<2x128xf32>, i32 -> vector<2x128xf32>
    %86 = arith.addf %84, %85 : vector<2x128xf32>
    %87 = math.tanh %86 : vector<2x128xf32>
    %88 = arith.mulf %87, %82 : vector<2x128xf32>
    %c6 = arith.constant 6 : index
    %c0_33 = arith.constant 0 : index
    %89 = vector.load %arg6[%c6, %c0_33] : memref<16x128xf32, #tpu.memory_space<vmem>>, vector<2x128xf32>
    tpu.vector_store %arg6[%c6, %c0_33], %88 {strides = array<i32>} : memref<16x128xf32, #tpu.memory_space<vmem>>, vector<2x128xf32>,
    %90 = vector.extract_strided_slice %17 {offsets = [8, 0], sizes = [2, 128], strides = [1, 1]} : vector<16x128xf32> to vector<2x128xf32>
    %cst_34 = arith.constant dense<0.000000e+00> : vector<2x128xf32>
    %91 = tpu.matmul %88, %12, %cst_34 {dimension_numbers = #tpu.dot_dimension_numbers<[1], [0], [0], [1], [0, 0, 1, 1], [], []>} : vector<2x128xf32>, vector<128x128xf32>, vector<2x128xf32> -> vector<2x128xf32>
    %92 = arith.addf %90, %91 : vector<2x128xf32>
    %93 = math.tanh %92 : vector<2x128xf32>
    %94 = arith.negf %92 : vector<2x128xf32>
    %95 = math.exp %94 : vector<2x128xf32>
    %cst_35 = arith.constant 1.000000e+00 : f32
    %96 = vector.broadcast %cst_35 : f32 to vector<2x128xf32>
    %97 = arith.addf %96, %95 : vector<2x128xf32>
    %98 = arith.divf %96, %97 : vector<2x128xf32>
    %99 = arith.select %5, %93, %98 : vector<2x128xi1>, vector<2x128xf32>
    %c64_i32_36 = arith.constant 64 : i32
    %100 = tpu.dynamic_rotate %99 by %c64_i32_36 dim 1 : vector<2x128xf32>, i32 -> vector<2x128xf32>
    %101 = arith.mulf %99, %100 : vector<2x128xf32>
    %102 = arith.mulf %99, %86 : vector<2x128xf32>
    %c32_i32_37 = arith.constant 32 : i32
    %103 = tpu.dynamic_rotate %101 by %c32_i32_37 dim 1 : vector<2x128xf32>, i32 -> vector<2x128xf32>
    %104 = arith.addf %102, %103 : vector<2x128xf32>
    %105 = math.tanh %104 : vector<2x128xf32>
    %106 = arith.mulf %105, %100 : vector<2x128xf32>
    %c8 = arith.constant 8 : index
    %c0_38 = arith.constant 0 : index
    %107 = vector.load %arg6[%c8, %c0_38] : memref<16x128xf32, #tpu.memory_space<vmem>>, vector<2x128xf32>
    tpu.vector_store %arg6[%c8, %c0_38], %106 {strides = array<i32>} : memref<16x128xf32, #tpu.memory_space<vmem>>, vector<2x128xf32>,
    %108 = vector.extract_strided_slice %17 {offsets = [10, 0], sizes = [2, 128], strides = [1, 1]} : vector<16x128xf32> to vector<2x128xf32>
    %cst_39 = arith.constant dense<0.000000e+00> : vector<2x128xf32>
    %109 = tpu.matmul %106, %12, %cst_39 {dimension_numbers = #tpu.dot_dimension_numbers<[1], [0], [0], [1], [0, 0, 1, 1], [], []>} : vector<2x128xf32>, vector<128x128xf32>, vector<2x128xf32> -> vector<2x128xf32>
    %110 = arith.addf %108, %109 : vector<2x128xf32>
    %111 = math.tanh %110 : vector<2x128xf32>
    %112 = arith.negf %110 : vector<2x128xf32>
    %113 = math.exp %112 : vector<2x128xf32>
    %cst_40 = arith.constant 1.000000e+00 : f32
    %114 = vector.broadcast %cst_40 : f32 to vector<2x128xf32>
    %115 = arith.addf %114, %113 : vector<2x128xf32>
    %116 = arith.divf %114, %115 : vector<2x128xf32>
    %117 = arith.select %5, %111, %116 : vector<2x128xi1>, vector<2x128xf32>
    %c64_i32_41 = arith.constant 64 : i32
    %118 = tpu.dynamic_rotate %117 by %c64_i32_41 dim 1 : vector<2x128xf32>, i32 -> vector<2x128xf32>
    %119 = arith.mulf %117, %118 : vector<2x128xf32>
    %120 = arith.mulf %117, %104 : vector<2x128xf32>
    %c32_i32_42 = arith.constant 32 : i32
    %121 = tpu.dynamic_rotate %119 by %c32_i32_42 dim 1 : vector<2x128xf32>, i32 -> vector<2x128xf32>
    %122 = arith.addf %120, %121 : vector<2x128xf32>
    %123 = math.tanh %122 : vector<2x128xf32>
    %124 = arith.mulf %123, %118 : vector<2x128xf32>
    %c10 = arith.constant 10 : index
    %c0_43 = arith.constant 0 : index
    %125 = vector.load %arg6[%c10, %c0_43] : memref<16x128xf32, #tpu.memory_space<vmem>>, vector<2x128xf32>
    tpu.vector_store %arg6[%c10, %c0_43], %124 {strides = array<i32>} : memref<16x128xf32, #tpu.memory_space<vmem>>, vector<2x128xf32>,
    %126 = vector.extract_strided_slice %17 {offsets = [12, 0], sizes = [2, 128], strides = [1, 1]} : vector<16x128xf32> to vector<2x128xf32>
    %cst_44 = arith.constant dense<0.000000e+00> : vector<2x128xf32>
    %127 = tpu.matmul %124, %12, %cst_44 {dimension_numbers = #tpu.dot_dimension_numbers<[1], [0], [0], [1], [0, 0, 1, 1], [], []>} : vector<2x128xf32>, vector<128x128xf32>, vector<2x128xf32> -> vector<2x128xf32>
    %128 = arith.addf %126, %127 : vector<2x128xf32>
    %129 = math.tanh %128 : vector<2x128xf32>
    %130 = arith.negf %128 : vector<2x128xf32>
    %131 = math.exp %130 : vector<2x128xf32>
    %cst_45 = arith.constant 1.000000e+00 : f32
    %132 = vector.broadcast %cst_45 : f32 to vector<2x128xf32>
    %133 = arith.addf %132, %131 : vector<2x128xf32>
    %134 = arith.divf %132, %133 : vector<2x128xf32>
    %135 = arith.select %5, %129, %134 : vector<2x128xi1>, vector<2x128xf32>
    %c64_i32_46 = arith.constant 64 : i32
    %136 = tpu.dynamic_rotate %135 by %c64_i32_46 dim 1 : vector<2x128xf32>, i32 -> vector<2x128xf32>
    %137 = arith.mulf %135, %136 : vector<2x128xf32>
    %138 = arith.mulf %135, %122 : vector<2x128xf32>
    %c32_i32_47 = arith.constant 32 : i32
    %139 = tpu.dynamic_rotate %137 by %c32_i32_47 dim 1 : vector<2x128xf32>, i32 -> vector<2x128xf32>
    %140 = arith.addf %138, %139 : vector<2x128xf32>
    %141 = math.tanh %140 : vector<2x128xf32>
    %142 = arith.mulf %141, %136 : vector<2x128xf32>
    %c12 = arith.constant 12 : index
    %c0_48 = arith.constant 0 : index
    %143 = vector.load %arg6[%c12, %c0_48] : memref<16x128xf32, #tpu.memory_space<vmem>>, vector<2x128xf32>
    tpu.vector_store %arg6[%c12, %c0_48], %142 {strides = array<i32>} : memref<16x128xf32, #tpu.memory_space<vmem>>, vector<2x128xf32>,
    %144 = vector.extract_strided_slice %17 {offsets = [14, 0], sizes = [2, 128], strides = [1, 1]} : vector<16x128xf32> to vector<2x128xf32>
    %cst_49 = arith.constant dense<0.000000e+00> : vector<2x128xf32>
    %145 = tpu.matmul %142, %12, %cst_49 {dimension_numbers = #tpu.dot_dimension_numbers<[1], [0], [0], [1], [0, 0, 1, 1], [], []>} : vector<2x128xf32>, vector<128x128xf32>, vector<2x128xf32> -> vector<2x128xf32>
    %146 = arith.addf %144, %145 : vector<2x128xf32>
    %147 = math.tanh %146 : vector<2x128xf32>
    %148 = arith.negf %146 : vector<2x128xf32>
    %149 = math.exp %148 : vector<2x128xf32>
    %cst_50 = arith.constant 1.000000e+00 : f32
    %150 = vector.broadcast %cst_50 : f32 to vector<2x128xf32>
    %151 = arith.addf %150, %149 : vector<2x128xf32>
    %152 = arith.divf %150, %151 : vector<2x128xf32>
    %153 = arith.select %5, %147, %152 : vector<2x128xi1>, vector<2x128xf32>
    %c64_i32_51 = arith.constant 64 : i32
    %154 = tpu.dynamic_rotate %153 by %c64_i32_51 dim 1 : vector<2x128xf32>, i32 -> vector<2x128xf32>
    %155 = arith.mulf %153, %154 : vector<2x128xf32>
    %156 = arith.mulf %153, %140 : vector<2x128xf32>
    %c32_i32_52 = arith.constant 32 : i32
    %157 = tpu.dynamic_rotate %155 by %c32_i32_52 dim 1 : vector<2x128xf32>, i32 -> vector<2x128xf32>
    %158 = arith.addf %156, %157 : vector<2x128xf32>
    %159 = math.tanh %158 : vector<2x128xf32>
    %160 = arith.mulf %159, %154 : vector<2x128xf32>
    %c14 = arith.constant 14 : index
    %c0_53 = arith.constant 0 : index
    %161 = vector.load %arg6[%c14, %c0_53] : memref<16x128xf32, #tpu.memory_space<vmem>>, vector<2x128xf32>
    tpu.vector_store %arg6[%c14, %c0_53], %160 {strides = array<i32>} : memref<16x128xf32, #tpu.memory_space<vmem>>, vector<2x128xf32>,
    %c0_54 = arith.constant 0 : index
    %c0_55 = arith.constant 0 : index
    %162 = vector.load %arg6[%c0_54, %c0_55] : memref<16x128xf32, #tpu.memory_space<vmem>>, vector<16x128xf32>
    %c1 = arith.constant 1 : index
    %c0_56 = arith.constant 0 : index
    %c0_57 = arith.constant 0 : index
    %163 = vector.load %arg3[%c1, %c0_56, %c0_57] : memref<2x128x128xf32, #tpu.memory_space<vmem>>, vector<1x128x128xf32>
    %164 = vector.shape_cast %163 : vector<1x128x128xf32> to vector<128x128xf32>
    %c1_58 = arith.constant 1 : index
    %c0_59 = arith.constant 0 : index
    %c0_60 = arith.constant 0 : index
    %165 = vector.load %arg4[%c1_58, %c0_59, %c0_60] : memref<2x128x128xf32, #tpu.memory_space<vmem>>, vector<1x128x128xf32>
    %166 = vector.shape_cast %165 : vector<1x128x128xf32> to vector<128x128xf32>
    %c1_61 = arith.constant 1 : index
    %c0_62 = arith.constant 0 : index
    %c0_63 = arith.constant 0 : index
    %167 = vector.load %arg5[%c1_61, %c0_62, %c0_63] : memref<2x1x128xf32, #tpu.memory_space<vmem>>, vector<1x1x128xf32>
    %168 = vector.shape_cast %167 : vector<1x1x128xf32> to vector<1x128xf32>
    %cst_64 = arith.constant dense<0.000000e+00> : vector<16x128xf32>
    %169 = tpu.matmul %162, %164, %cst_64 {dimension_numbers = #tpu.dot_dimension_numbers<[1], [0], [0], [1], [0, 0, 1, 1], [], []>} : vector<16x128xf32>, vector<128x128xf32>, vector<16x128xf32> -> vector<16x128xf32>
    %170 = vector.broadcast %168 : vector<1x128xf32> to vector<16x128xf32>
    %171 = arith.addf %169, %170 : vector<16x128xf32>
    %172 = vector.extract_strided_slice %171 {offsets = [0, 0], sizes = [2, 128], strides = [1, 1]} : vector<16x128xf32> to vector<2x128xf32>
    %cst_65 = arith.constant dense<0.000000e+00> : vector<2x128xf32>
    %173 = tpu.matmul %6, %166, %cst_65 {dimension_numbers = #tpu.dot_dimension_numbers<[1], [0], [0], [1], [0, 0, 1, 1], [], []>} : vector<2x128xf32>, vector<128x128xf32>, vector<2x128xf32> -> vector<2x128xf32>
    %174 = arith.addf %172, %173 : vector<2x128xf32>
    %175 = math.tanh %174 : vector<2x128xf32>
    %176 = arith.negf %174 : vector<2x128xf32>
    %177 = math.exp %176 : vector<2x128xf32>
    %cst_66 = arith.constant 1.000000e+00 : f32
    %178 = vector.broadcast %cst_66 : f32 to vector<2x128xf32>
    %179 = arith.addf %178, %177 : vector<2x128xf32>
    %180 = arith.divf %178, %179 : vector<2x128xf32>
    %181 = arith.select %5, %175, %180 : vector<2x128xi1>, vector<2x128xf32>
    %c64_i32_67 = arith.constant 64 : i32
    %182 = tpu.dynamic_rotate %181 by %c64_i32_67 dim 1 : vector<2x128xf32>, i32 -> vector<2x128xf32>
    %183 = arith.mulf %181, %182 : vector<2x128xf32>
    %184 = arith.mulf %181, %7 : vector<2x128xf32>
    %c32_i32_68 = arith.constant 32 : i32
    %185 = tpu.dynamic_rotate %183 by %c32_i32_68 dim 1 : vector<2x128xf32>, i32 -> vector<2x128xf32>
    %186 = arith.addf %184, %185 : vector<2x128xf32>
    %187 = math.tanh %186 : vector<2x128xf32>
    %188 = arith.mulf %187, %182 : vector<2x128xf32>
    %c0_69 = arith.constant 0 : index
    %c0_70 = arith.constant 0 : index
    %189 = vector.load %arg6[%c0_69, %c0_70] : memref<16x128xf32, #tpu.memory_space<vmem>>, vector<2x128xf32>
    tpu.vector_store %arg6[%c0_69, %c0_70], %188 {strides = array<i32>} : memref<16x128xf32, #tpu.memory_space<vmem>>, vector<2x128xf32>,
    %190 = vector.extract_strided_slice %171 {offsets = [2, 0], sizes = [2, 128], strides = [1, 1]} : vector<16x128xf32> to vector<2x128xf32>
    %cst_71 = arith.constant dense<0.000000e+00> : vector<2x128xf32>
    %191 = tpu.matmul %188, %166, %cst_71 {dimension_numbers = #tpu.dot_dimension_numbers<[1], [0], [0], [1], [0, 0, 1, 1], [], []>} : vector<2x128xf32>, vector<128x128xf32>, vector<2x128xf32> -> vector<2x128xf32>
    %192 = arith.addf %190, %191 : vector<2x128xf32>
    %193 = math.tanh %192 : vector<2x128xf32>
    %194 = arith.negf %192 : vector<2x128xf32>
    %195 = math.exp %194 : vector<2x128xf32>
    %cst_72 = arith.constant 1.000000e+00 : f32
    %196 = vector.broadcast %cst_72 : f32 to vector<2x128xf32>
    %197 = arith.addf %196, %195 : vector<2x128xf32>
    %198 = arith.divf %196, %197 : vector<2x128xf32>
    %199 = arith.select %5, %193, %198 : vector<2x128xi1>, vector<2x128xf32>
    %c64_i32_73 = arith.constant 64 : i32
    %200 = tpu.dynamic_rotate %199 by %c64_i32_73 dim 1 : vector<2x128xf32>, i32 -> vector<2x128xf32>
    %201 = arith.mulf %199, %200 : vector<2x128xf32>
    %202 = arith.mulf %199, %186 : vector<2x128xf32>
    %c32_i32_74 = arith.constant 32 : i32
    %203 = tpu.dynamic_rotate %201 by %c32_i32_74 dim 1 : vector<2x128xf32>, i32 -> vector<2x128xf32>
    %204 = arith.addf %202, %203 : vector<2x128xf32>
    %205 = math.tanh %204 : vector<2x128xf32>
    %206 = arith.mulf %205, %200 : vector<2x128xf32>
    %c2_75 = arith.constant 2 : index
    %c0_76 = arith.constant 0 : index
    %207 = vector.load %arg6[%c2_75, %c0_76] : memref<16x128xf32, #tpu.memory_space<vmem>>, vector<2x128xf32>
    tpu.vector_store %arg6[%c2_75, %c0_76], %206 {strides = array<i32>} : memref<16x128xf32, #tpu.memory_space<vmem>>, vector<2x128xf32>,
    %208 = vector.extract_strided_slice %171 {offsets = [4, 0], sizes = [2, 128], strides = [1, 1]} : vector<16x128xf32> to vector<2x128xf32>
    %cst_77 = arith.constant dense<0.000000e+00> : vector<2x128xf32>
    %209 = tpu.matmul %206, %166, %cst_77 {dimension_numbers = #tpu.dot_dimension_numbers<[1], [0], [0], [1], [0, 0, 1, 1], [], []>} : vector<2x128xf32>, vector<128x128xf32>, vector<2x128xf32> -> vector<2x128xf32>
    %210 = arith.addf %208, %209 : vector<2x128xf32>
    %211 = math.tanh %210 : vector<2x128xf32>
    %212 = arith.negf %210 : vector<2x128xf32>
    %213 = math.exp %212 : vector<2x128xf32>
    %cst_78 = arith.constant 1.000000e+00 : f32
    %214 = vector.broadcast %cst_78 : f32 to vector<2x128xf32>
    %215 = arith.addf %214, %213 : vector<2x128xf32>
    %216 = arith.divf %214, %215 : vector<2x128xf32>
    %217 = arith.select %5, %211, %216 : vector<2x128xi1>, vector<2x128xf32>
    %c64_i32_79 = arith.constant 64 : i32
    %218 = tpu.dynamic_rotate %217 by %c64_i32_79 dim 1 : vector<2x128xf32>, i32 -> vector<2x128xf32>
    %219 = arith.mulf %217, %218 : vector<2x128xf32>
    %220 = arith.mulf %217, %204 : vector<2x128xf32>
    %c32_i32_80 = arith.constant 32 : i32
    %221 = tpu.dynamic_rotate %219 by %c32_i32_80 dim 1 : vector<2x128xf32>, i32 -> vector<2x128xf32>
    %222 = arith.addf %220, %221 : vector<2x128xf32>
    %223 = math.tanh %222 : vector<2x128xf32>
    %224 = arith.mulf %223, %218 : vector<2x128xf32>
    %c4_81 = arith.constant 4 : index
    %c0_82 = arith.constant 0 : index
    %225 = vector.load %arg6[%c4_81, %c0_82] : memref<16x128xf32, #tpu.memory_space<vmem>>, vector<2x128xf32>
    tpu.vector_store %arg6[%c4_81, %c0_82], %224 {strides = array<i32>} : memref<16x128xf32, #tpu.memory_space<vmem>>, vector<2x128xf32>,
    %226 = vector.extract_strided_slice %171 {offsets = [6, 0], sizes = [2, 128], strides = [1, 1]} : vector<16x128xf32> to vector<2x128xf32>
    %cst_83 = arith.constant dense<0.000000e+00> : vector<2x128xf32>
    %227 = tpu.matmul %224, %166, %cst_83 {dimension_numbers = #tpu.dot_dimension_numbers<[1], [0], [0], [1], [0, 0, 1, 1], [], []>} : vector<2x128xf32>, vector<128x128xf32>, vector<2x128xf32> -> vector<2x128xf32>
    %228 = arith.addf %226, %227 : vector<2x128xf32>
    %229 = math.tanh %228 : vector<2x128xf32>
    %230 = arith.negf %228 : vector<2x128xf32>
    %231 = math.exp %230 : vector<2x128xf32>
    %cst_84 = arith.constant 1.000000e+00 : f32
    %232 = vector.broadcast %cst_84 : f32 to vector<2x128xf32>
    %233 = arith.addf %232, %231 : vector<2x128xf32>
    %234 = arith.divf %232, %233 : vector<2x128xf32>
    %235 = arith.select %5, %229, %234 : vector<2x128xi1>, vector<2x128xf32>
    %c64_i32_85 = arith.constant 64 : i32
    %236 = tpu.dynamic_rotate %235 by %c64_i32_85 dim 1 : vector<2x128xf32>, i32 -> vector<2x128xf32>
    %237 = arith.mulf %235, %236 : vector<2x128xf32>
    %238 = arith.mulf %235, %222 : vector<2x128xf32>
    %c32_i32_86 = arith.constant 32 : i32
    %239 = tpu.dynamic_rotate %237 by %c32_i32_86 dim 1 : vector<2x128xf32>, i32 -> vector<2x128xf32>
    %240 = arith.addf %238, %239 : vector<2x128xf32>
    %241 = math.tanh %240 : vector<2x128xf32>
    %242 = arith.mulf %241, %236 : vector<2x128xf32>
    %c6_87 = arith.constant 6 : index
    %c0_88 = arith.constant 0 : index
    %243 = vector.load %arg6[%c6_87, %c0_88] : memref<16x128xf32, #tpu.memory_space<vmem>>, vector<2x128xf32>
    tpu.vector_store %arg6[%c6_87, %c0_88], %242 {strides = array<i32>} : memref<16x128xf32, #tpu.memory_space<vmem>>, vector<2x128xf32>,
    %244 = vector.extract_strided_slice %171 {offsets = [8, 0], sizes = [2, 128], strides = [1, 1]} : vector<16x128xf32> to vector<2x128xf32>
    %cst_89 = arith.constant dense<0.000000e+00> : vector<2x128xf32>
    %245 = tpu.matmul %242, %166, %cst_89 {dimension_numbers = #tpu.dot_dimension_numbers<[1], [0], [0], [1], [0, 0, 1, 1], [], []>} : vector<2x128xf32>, vector<128x128xf32>, vector<2x128xf32> -> vector<2x128xf32>
    %246 = arith.addf %244, %245 : vector<2x128xf32>
    %247 = math.tanh %246 : vector<2x128xf32>
    %248 = arith.negf %246 : vector<2x128xf32>
    %249 = math.exp %248 : vector<2x128xf32>
    %cst_90 = arith.constant 1.000000e+00 : f32
    %250 = vector.broadcast %cst_90 : f32 to vector<2x128xf32>
    %251 = arith.addf %250, %249 : vector<2x128xf32>
    %252 = arith.divf %250, %251 : vector<2x128xf32>
    %253 = arith.select %5, %247, %252 : vector<2x128xi1>, vector<2x128xf32>
    %c64_i32_91 = arith.constant 64 : i32
    %254 = tpu.dynamic_rotate %253 by %c64_i32_91 dim 1 : vector<2x128xf32>, i32 -> vector<2x128xf32>
    %255 = arith.mulf %253, %254 : vector<2x128xf32>
    %256 = arith.mulf %253, %240 : vector<2x128xf32>
    %c32_i32_92 = arith.constant 32 : i32
    %257 = tpu.dynamic_rotate %255 by %c32_i32_92 dim 1 : vector<2x128xf32>, i32 -> vector<2x128xf32>
    %258 = arith.addf %256, %257 : vector<2x128xf32>
    %259 = math.tanh %258 : vector<2x128xf32>
    %260 = arith.mulf %259, %254 : vector<2x128xf32>
    %c8_93 = arith.constant 8 : index
    %c0_94 = arith.constant 0 : index
    %261 = vector.load %arg6[%c8_93, %c0_94] : memref<16x128xf32, #tpu.memory_space<vmem>>, vector<2x128xf32>
    tpu.vector_store %arg6[%c8_93, %c0_94], %260 {strides = array<i32>} : memref<16x128xf32, #tpu.memory_space<vmem>>, vector<2x128xf32>,
    %262 = vector.extract_strided_slice %171 {offsets = [10, 0], sizes = [2, 128], strides = [1, 1]} : vector<16x128xf32> to vector<2x128xf32>
    %cst_95 = arith.constant dense<0.000000e+00> : vector<2x128xf32>
    %263 = tpu.matmul %260, %166, %cst_95 {dimension_numbers = #tpu.dot_dimension_numbers<[1], [0], [0], [1], [0, 0, 1, 1], [], []>} : vector<2x128xf32>, vector<128x128xf32>, vector<2x128xf32> -> vector<2x128xf32>
    %264 = arith.addf %262, %263 : vector<2x128xf32>
    %265 = math.tanh %264 : vector<2x128xf32>
    %266 = arith.negf %264 : vector<2x128xf32>
    %267 = math.exp %266 : vector<2x128xf32>
    %cst_96 = arith.constant 1.000000e+00 : f32
    %268 = vector.broadcast %cst_96 : f32 to vector<2x128xf32>
    %269 = arith.addf %268, %267 : vector<2x128xf32>
    %270 = arith.divf %268, %269 : vector<2x128xf32>
    %271 = arith.select %5, %265, %270 : vector<2x128xi1>, vector<2x128xf32>
    %c64_i32_97 = arith.constant 64 : i32
    %272 = tpu.dynamic_rotate %271 by %c64_i32_97 dim 1 : vector<2x128xf32>, i32 -> vector<2x128xf32>
    %273 = arith.mulf %271, %272 : vector<2x128xf32>
    %274 = arith.mulf %271, %258 : vector<2x128xf32>
    %c32_i32_98 = arith.constant 32 : i32
    %275 = tpu.dynamic_rotate %273 by %c32_i32_98 dim 1 : vector<2x128xf32>, i32 -> vector<2x128xf32>
    %276 = arith.addf %274, %275 : vector<2x128xf32>
    %277 = math.tanh %276 : vector<2x128xf32>
    %278 = arith.mulf %277, %272 : vector<2x128xf32>
    %c10_99 = arith.constant 10 : index
    %c0_100 = arith.constant 0 : index
    %279 = vector.load %arg6[%c10_99, %c0_100] : memref<16x128xf32, #tpu.memory_space<vmem>>, vector<2x128xf32>
    tpu.vector_store %arg6[%c10_99, %c0_100], %278 {strides = array<i32>} : memref<16x128xf32, #tpu.memory_space<vmem>>, vector<2x128xf32>,
    %280 = vector.extract_strided_slice %171 {offsets = [12, 0], sizes = [2, 128], strides = [1, 1]} : vector<16x128xf32> to vector<2x128xf32>
    %cst_101 = arith.constant dense<0.000000e+00> : vector<2x128xf32>
    %281 = tpu.matmul %278, %166, %cst_101 {dimension_numbers = #tpu.dot_dimension_numbers<[1], [0], [0], [1], [0, 0, 1, 1], [], []>} : vector<2x128xf32>, vector<128x128xf32>, vector<2x128xf32> -> vector<2x128xf32>
    %282 = arith.addf %280, %281 : vector<2x128xf32>
    %283 = math.tanh %282 : vector<2x128xf32>
    %284 = arith.negf %282 : vector<2x128xf32>
    %285 = math.exp %284 : vector<2x128xf32>
    %cst_102 = arith.constant 1.000000e+00 : f32
    %286 = vector.broadcast %cst_102 : f32 to vector<2x128xf32>
    %287 = arith.addf %286, %285 : vector<2x128xf32>
    %288 = arith.divf %286, %287 : vector<2x128xf32>
    %289 = arith.select %5, %283, %288 : vector<2x128xi1>, vector<2x128xf32>
    %c64_i32_103 = arith.constant 64 : i32
    %290 = tpu.dynamic_rotate %289 by %c64_i32_103 dim 1 : vector<2x128xf32>, i32 -> vector<2x128xf32>
    %291 = arith.mulf %289, %290 : vector<2x128xf32>
    %292 = arith.mulf %289, %276 : vector<2x128xf32>
    %c32_i32_104 = arith.constant 32 : i32
    %293 = tpu.dynamic_rotate %291 by %c32_i32_104 dim 1 : vector<2x128xf32>, i32 -> vector<2x128xf32>
    %294 = arith.addf %292, %293 : vector<2x128xf32>
    %295 = math.tanh %294 : vector<2x128xf32>
    %296 = arith.mulf %295, %290 : vector<2x128xf32>
    %c12_105 = arith.constant 12 : index
    %c0_106 = arith.constant 0 : index
    %297 = vector.load %arg6[%c12_105, %c0_106] : memref<16x128xf32, #tpu.memory_space<vmem>>, vector<2x128xf32>
    tpu.vector_store %arg6[%c12_105, %c0_106], %296 {strides = array<i32>} : memref<16x128xf32, #tpu.memory_space<vmem>>, vector<2x128xf32>,
    %298 = vector.extract_strided_slice %171 {offsets = [14, 0], sizes = [2, 128], strides = [1, 1]} : vector<16x128xf32> to vector<2x128xf32>
    %cst_107 = arith.constant dense<0.000000e+00> : vector<2x128xf32>
    %299 = tpu.matmul %296, %166, %cst_107 {dimension_numbers = #tpu.dot_dimension_numbers<[1], [0], [0], [1], [0, 0, 1, 1], [], []>} : vector<2x128xf32>, vector<128x128xf32>, vector<2x128xf32> -> vector<2x128xf32>
    %300 = arith.addf %298, %299 : vector<2x128xf32>
    %301 = math.tanh %300 : vector<2x128xf32>
    %302 = arith.negf %300 : vector<2x128xf32>
    %303 = math.exp %302 : vector<2x128xf32>
    %cst_108 = arith.constant 1.000000e+00 : f32
    %304 = vector.broadcast %cst_108 : f32 to vector<2x128xf32>
    %305 = arith.addf %304, %303 : vector<2x128xf32>
    %306 = arith.divf %304, %305 : vector<2x128xf32>
    %307 = arith.select %5, %301, %306 : vector<2x128xi1>, vector<2x128xf32>
    %c64_i32_109 = arith.constant 64 : i32
    %308 = tpu.dynamic_rotate %307 by %c64_i32_109 dim 1 : vector<2x128xf32>, i32 -> vector<2x128xf32>
    %309 = arith.mulf %307, %308 : vector<2x128xf32>
    %310 = arith.mulf %307, %294 : vector<2x128xf32>
    %c32_i32_110 = arith.constant 32 : i32
    %311 = tpu.dynamic_rotate %309 by %c32_i32_110 dim 1 : vector<2x128xf32>, i32 -> vector<2x128xf32>
    %312 = arith.addf %310, %311 : vector<2x128xf32>
    %313 = math.tanh %312 : vector<2x128xf32>
    %314 = arith.mulf %313, %308 : vector<2x128xf32>
    %c14_111 = arith.constant 14 : index
    %c0_112 = arith.constant 0 : index
    %315 = vector.load %arg6[%c14_111, %c0_112] : memref<16x128xf32, #tpu.memory_space<vmem>>, vector<2x128xf32>
    tpu.vector_store %arg6[%c14_111, %c0_112], %314 {strides = array<i32>} : memref<16x128xf32, #tpu.memory_space<vmem>>, vector<2x128xf32>,
    %c0_113 = arith.constant 0 : index
    %c0_114 = arith.constant 0 : index
    %316 = vector.load %arg7[%c0_113, %c0_114] : memref<2x128xf32, #tpu.memory_space<vmem>>, vector<2x128xf32>
    tpu.vector_store %arg7[%c0_113, %c0_114], %312 {strides = array<i32>} : memref<2x128xf32, #tpu.memory_space<vmem>>, vector<2x128xf32>,
    return
  }
}

</mosaic_0001>

<llo_original>
// kernel: tpu_custom_call.1
$region0: #{tpu_custom_call.1}
  #allocation0 [shape = 'u32[]', space=smem, size = 0x4, offset = 0x4, fixed_abs, tag = 'smem constant byte address 0x4 - core index']
  #allocation1 [shape = 'u32[144,128]{1,0:T(1,128)}', space=vmem, size = 0x12000, scoped, tag = 'internal scratch']
  %s0 = inlined_call_operand.hbm [shape: f32[16,128], index: 0, kind: input, shape index: {}]
  %s1 = inlined_call_operand.vmem [shape: f32[2,128], index: 1, kind: input, shape index: {}]
  %s2 = inlined_call_operand.vmem [shape: f32[2,128], index: 2, kind: input, shape index: {}]
  %s3 = inlined_call_operand.hbm [shape: f32[2,128,128], index: 3, kind: input, shape index: {}]
  %s4 = inlined_call_operand.hbm [shape: f32[2,128,128], index: 4, kind: input, shape index: {}]
  %s5 = inlined_call_operand.vmem [shape: f32[2,1,128], index: 5, kind: input, shape index: {}]
  %s6 = inlined_call_operand.hbm [shape: f32[16,128], index: 6, kind: output, shape index: {0}]
  %s7 = inlined_call_operand.hbm [shape: f32[2,128], index: 7, kind: output, shape index: {1}]
  %8 = xla_tuple %s6, %s7
  %s9 = sld [smem:[#allocation0]]
  $region54: #{tpu_custom_call.1} parent=0
    _
  %s11 = ssub.s32 1, %s9
  %s12 = scalar_select 0, %s11, %s9
  $region1: #{tpu_custom_call.1} parent=0
    #allocation2 [shape = 'u8[8192]{0}', space=vmem, size = 0x2000, scoped, tag = 'input window, operand 0, single buffered']
    #allocation3 [shape = 's32[1]{0}', space=sflag, size = 0x4, scoped, tag = 'scoped memory for tpu_custom_call.1']
    #allocation4 [shape = 's32[1]{0}', space=sflag, size = 0x4, scoped, tag = 'scoped memory for tpu_custom_call.1']
    #allocation5 [shape = 'u8[131072]{0}', space=vmem, size = 0x20000, scoped, tag = 'input window, operand 3, single buffered']
    #allocation6 [shape = 's32[1]{0}', space=sflag, size = 0x4, scoped, tag = 'scoped memory for tpu_custom_call.1']
    #allocation7 [shape = 'u8[131072]{0}', space=vmem, size = 0x20000, scoped, tag = 'input window, operand 4, single buffered']
    #allocation8 [shape = 'u8[8192]{0}', space=vmem, size = 0x2000, scoped, tag = 'output window, operand 0, single buffered']
    #allocation9 [shape = 'u8[1024]{0}', space=vmem, size = 0x400, scoped, tag = 'output window, operand 1, single buffered']
    #allocation10 [shape = 's32[1]{0}', space=sflag, size = 0x4, scoped, tag = 'scoped memory for tpu_custom_call.1']
    %13 = vsyncpa [#allocation3], 0
    %14 = vsyncpa [#allocation6], 0
    %15 = vsyncpa [#allocation4], 0
    %16 = vsyncpa [#allocation10], 0
    // Predicated region
    $region2: #{tpu_custom_call.1} parent=1 // pred_check
      _
    $region3: #{tpu_custom_call.1} parent=1 // pred_check_branch
      %18 = sbr.rel (0) target = $region5
    $region4: #{tpu_custom_call.1} parent=1 // pred_region
      %s20 = ssub.s32 256, 256
      %21 = vsyncadd [#allocation3], %s20
      %s22 = sshll.u32 [#allocation2], 4
      %s23 = int_to_ptr.vmem [resolvable:$true] %s22
      %28 = dma.hbm_to_vmem [thread:$0]  %s0, 256, %s23, [#allocation3], 128, 128, 8
    $region5: #{tpu_custom_call.1} parent=1 // pred_fallthru
      _
    // Predicated region
    $region6: #{tpu_custom_call.1} parent=1 // pred_check
      _
    $region7: #{tpu_custom_call.1} parent=1 // pred_check_branch
      %30 = sbr.rel (0) target = $region9
    $region8: #{tpu_custom_call.1} parent=1 // pred_region
      _
    $region9: #{tpu_custom_call.1} parent=1 // pred_fallthru
      _
    // Predicated region
    $region10: #{tpu_custom_call.1} parent=1 // pred_check
      _
    $region11: #{tpu_custom_call.1} parent=1 // pred_check_branch
      %32 = sbr.rel (0) target = $region13
    $region12: #{tpu_custom_call.1} parent=1 // pred_region
      _
    $region13: #{tpu_custom_call.1} parent=1 // pred_fallthru
      _
    // Predicated region
    $region14: #{tpu_custom_call.1} parent=1 // pred_check
      _
    $region15: #{tpu_custom_call.1} parent=1 // pred_check_branch
      %34 = sbr.rel (0) target = $region17
    $region16: #{tpu_custom_call.1} parent=1 // pred_region
      %s36 = ssub.s32 4096, 4096
      %37 = vsyncadd [#allocation6], %s36
      %s38 = sshll.u32 [#allocation5], 4
      %s39 = int_to_ptr.vmem [resolvable:$true] %s38
      %44 = dma.hbm_to_vmem [thread:$0]  %s3, 4096, %s39, [#allocation6], 128, 128, 8
    $region17: #{tpu_custom_call.1} parent=1 // pred_fallthru
      _
    // Predicated region
    $region18: #{tpu_custom_call.1} parent=1 // pred_check
      _
    $region19: #{tpu_custom_call.1} parent=1 // pred_check_branch
      %46 = sbr.rel (0) target = $region21
    $region20: #{tpu_custom_call.1} parent=1 // pred_region
      %s48 = ssub.s32 4096, 4096
      %49 = vsyncadd [#allocation6], %s48
      %s50 = sshll.u32 [#allocation7], 4
      %s51 = int_to_ptr.vmem [resolvable:$true] %s50
      %56 = dma.hbm_to_vmem [thread:$0]  %s4, 4096, %s51, [#allocation6], 128, 128, 8
    $region21: #{tpu_custom_call.1} parent=1 // pred_fallthru
      _
    // Predicated region
    $region22: #{tpu_custom_call.1} parent=1 // pred_check
      _
    $region23: #{tpu_custom_call.1} parent=1 // pred_check_branch
      %58 = sbr.rel (0) target = $region25
    $region24: #{tpu_custom_call.1} parent=1 // pred_region
      _
    $region25: #{tpu_custom_call.1} parent=1 // pred_fallthru
      _
    // Predicated region
    $region26: #{tpu_custom_call.1} parent=1 // pred_check
      _
    $region27: #{tpu_custom_call.1} parent=1 // pred_check_branch
      %60 = sbr.rel (0) target = $region29
    $region28: #{tpu_custom_call.1} parent=1 // pred_region
      %61 = dma.done [#allocation3], 256
    $region29: #{tpu_custom_call.1} parent=1 // pred_fallthru
      _
    // Predicated region
    $region30: #{tpu_custom_call.1} parent=1 // pred_check
      _
    $region31: #{tpu_custom_call.1} parent=1 // pred_check_branch
      %63 = sbr.rel (0) target = $region33
    $region32: #{tpu_custom_call.1} parent=1 // pred_region
      %64 = dma.done [#allocation6], 4096
    $region33: #{tpu_custom_call.1} parent=1 // pred_fallthru
      _
    // Predicated region
    $region34: #{tpu_custom_call.1} parent=1 // pred_check
      _
    $region35: #{tpu_custom_call.1} parent=1 // pred_check_branch
      %66 = sbr.rel (0) target = $region37
    $region36: #{tpu_custom_call.1} parent=1 // pred_region
      %67 = dma.done [#allocation6], 4096
    $region37: #{tpu_custom_call.1} parent=1 // pred_fallthru
      _
    %v68 = vlaneseq
    %v69 = vand.u32 %v68, 127
    %vm70 = vcmp.ge.s32.totalorder %v69, 64
    %vm71 = vcmp.lt.s32.totalorder %v69, 96
    %vm72 = vmand %vm70, %vm71
    %v73 = vld [vmem:[%s1] sm:$0x3]
    %v74 = vld [vmem:[%s2] sm:$0x3]
    %v75 = vld [vmem:[#allocation2] sm:$0xff]
    %v76 = vld [vmem:[#allocation2 + $0x8] sm:$0xff]
    %v77 = vld [vmem:[#allocation5] sm:$0xff]
    %v78 = vld [vmem:[#allocation5 + $0x8] sm:$0xff]
    %v79 = vld [vmem:[#allocation5 + $0x10] sm:$0xff]
    %v80 = vld [vmem:[#allocation5 + $0x18] sm:$0xff]
    %v81 = vld [vmem:[#allocation5 + $0x20] sm:$0xff]
    %v82 = vld [vmem:[#allocation5 + $0x28] sm:$0xff]
    %v83 = vld [vmem:[#allocation5 + $0x30] sm:$0xff]
    %v84 = vld [vmem:[#allocation5 + $0x38] sm:$0xff]
    %v85 = vld [vmem:[#allocation5 + $0x40] sm:$0xff]
    %v86 = vld [vmem:[#allocation5 + $0x48] sm:$0xff]
    %v87 = vld [vmem:[#allocation5 + $0x50] sm:$0xff]
    %v88 = vld [vmem:[#allocation5 + $0x58] sm:$0xff]
    %v89 = vld [vmem:[#allocation5 + $0x60] sm:$0xff]
    %v90 = vld [vmem:[#allocation5 + $0x68] sm:$0xff]
    %v91 = vld [vmem:[#allocation5 + $0x70] sm:$0xff]
    %v92 = vld [vmem:[#allocation5 + $0x78] sm:$0xff]
    %v93 = vld [vmem:[#allocation7] sm:$0xff]
    %v94 = vld [vmem:[#allocation7 + $0x8] sm:$0xff]
    %v95 = vld [vmem:[#allocation7 + $0x10] sm:$0xff]
    %v96 = vld [vmem:[#allocation7 + $0x18] sm:$0xff]
    %v97 = vld [vmem:[#allocation7 + $0x20] sm:$0xff]
    %v98 = vld [vmem:[#allocation7 + $0x28] sm:$0xff]
    %v99 = vld [vmem:[#allocation7 + $0x30] sm:$0xff]
    %v100 = vld [vmem:[#allocation7 + $0x38] sm:$0xff]
    %v101 = vld [vmem:[#allocation7 + $0x40] sm:$0xff]
    %v102 = vld [vmem:[#allocation7 + $0x48] sm:$0xff]
    %v103 = vld [vmem:[#allocation7 + $0x50] sm:$0xff]
    %v104 = vld [vmem:[#allocation7 + $0x58] sm:$0xff]
    %v105 = vld [vmem:[#allocation7 + $0x60] sm:$0xff]
    %v106 = vld [vmem:[#allocation7 + $0x68] sm:$0xff]
    %v107 = vld [vmem:[#allocation7 + $0x70] sm:$0xff]
    %v108 = vld [vmem:[#allocation7 + $0x78] sm:$0xff]
    %v109 = vld [vmem:[%s5] sm:$0x1]
    %v111 = vlaneseq
    %v112 = vshrl.u32 %v111, 7
    %v113 = vsub.s32 0, %v112
    %v114 = vrot.slane %v109, %v113
    %116 = vmatprep.subr.mxu0 0.0
    %117 = vmatpush1.msra.mxu0 %v77
    %118 = vmatprep.subr.mxu0 0.0
    %119 = vmatpush1.msra.mxu0 %v78
    %120 = vmatprep.subr.mxu0 0.0
    %121 = vmatpush1.msra.mxu0 %v79
    %122 = vmatprep.subr.mxu0 0.0
    %123 = vmatpush1.msra.mxu0 %v80
    %124 = vmatprep.subr.mxu0 0.0
    %125 = vmatpush1.msra.mxu0 %v81
    %126 = vmatprep.subr.mxu0 0.0
    %127 = vmatpush1.msra.mxu0 %v82
    %128 = vmatprep.subr.mxu0 0.0
    %129 = vmatpush1.msra.mxu0 %v83
    %130 = vmatprep.subr.mxu0 0.0
    %131 = vmatpush1.msra.mxu0 %v84
    %132 = vmatprep.subr.mxu0 0.0
    %133 = vmatpush1.msra.mxu0 %v85
    %134 = vmatprep.subr.mxu0 0.0
    %135 = vmatpush1.msra.mxu0 %v86
    %136 = vmatprep.subr.mxu0 0.0
    %137 = vmatpush1.msra.mxu0 %v87
    %138 = vmatprep.subr.mxu0 0.0
    %139 = vmatpush1.msra.mxu0 %v88
    %140 = vmatprep.subr.mxu0 0.0
    %141 = vmatpush1.msra.mxu0 %v89
    %142 = vmatprep.subr.mxu0 0.0
    %143 = vmatpush1.msra.mxu0 %v90
    %144 = vmatprep.subr.mxu0 0.0
    %145 = vmatpush1.msra.mxu0 %v91
    %146 = vmatprep.subr.mxu0 0.0
    %147 = vmatpush1.msra.mxu0 %v92
    %148 = vmatprep.subr.mxu0 0.0
    %149 = vmatpush1.msra.mxu0 0.0
    %150 = vmatprep.subr.mxu0 0.0
    %151 = vmatpush1.msra.mxu0 0.0
    %152 = vmatprep.subr.mxu0 0.0
    %153 = vmatpush1.msra.mxu0 0.0
    %154 = vmatprep.subr.mxu0 0.0
    %155 = vmatpush1.msra.mxu0 0.0
    %156 = vmatprep.subr.mxu0 0.0
    %157 = vmatpush1.msra.mxu0 0.0
    %158 = vmatprep.subr.mxu0 0.0
    %159 = vmatpush1.msra.mxu0 0.0
    %160 = vmatprep.subr.mxu0 0.0
    %161 = vmatpush1.msra.mxu0 0.0
    %162 = vmatprep.subr.mxu0 0.0
    %163 = vmatpush1.msra.mxu0 0.0
    %164 = vmatprep.subr.mxu0 0.0
    %165 = vmatpush1.msra.mxu0 0.0
    %166 = vmatprep.subr.mxu0 0.0
    %167 = vmatpush1.msra.mxu0 0.0
    %168 = vmatprep.subr.mxu0 0.0
    %169 = vmatpush1.msra.mxu0 0.0
    %170 = vmatprep.subr.mxu0 0.0
    %171 = vmatpush1.msra.mxu0 0.0
    %172 = vmatprep.subr.mxu0 0.0
    %173 = vmatpush1.msra.mxu0 0.0
    %174 = vmatprep.subr.mxu0 0.0
    %175 = vmatpush1.msra.mxu0 0.0
    %176 = vmatprep.subr.mxu0 0.0
    %177 = vmatpush1.msra.mxu0 0.0
    %178 = vmatprep.subr.mxu0 0.0
    %179 = vmatpush1.msra.mxu0 0.0
    %180 = vmatprep.mubr.f32.mxu0 0.0
    %181 = vmatmul.mubr.f32.gmra.mrb[0].mxu0 %v75
    %v182 = vpop.f32.mrb[0].mxu0
    %v183 = vadd.f32 %v114, %v182
    %v184 = vpop.f32.mrb[0].mxu0
    %185 = vmatprep.mubr.f32.mxu0 0.0
    %186 = vmatmul.mubr.f32.gmra.mrb[0].mxu0 %v76
    %v187 = vpop.f32.mrb[0].mxu0
    %v188 = vadd.f32 %v114, %v187
    %v189 = vpop.f32.mrb[0].mxu0
    %190 = vdwg.mxu0
    %191 = vmatprep.subr.mxu0 0.0
    %192 = vmatpush1.msra.mxu0 %v93
    %193 = vmatprep.subr.mxu0 0.0
    %194 = vmatpush1.msra.mxu0 %v94
    %195 = vmatprep.subr.mxu0 0.0
    %196 = vmatpush1.msra.mxu0 %v95
    %197 = vmatprep.subr.mxu0 0.0
    %198 = vmatpush1.msra.mxu0 %v96
    %199 = vmatprep.subr.mxu0 0.0
    %200 = vmatpush1.msra.mxu0 %v97
    %201 = vmatprep.subr.mxu0 0.0
    %202 = vmatpush1.msra.mxu0 %v98
    %203 = vmatprep.subr.mxu0 0.0
    %204 = vmatpush1.msra.mxu0 %v99
    %205 = vmatprep.subr.mxu0 0.0
    %206 = vmatpush1.msra.mxu0 %v100
    %207 = vmatprep.subr.mxu0 0.0
    %208 = vmatpush1.msra.mxu0 %v101
    %209 = vmatprep.subr.mxu0 0.0
    %210 = vmatpush1.msra.mxu0 %v102
    %211 = vmatprep.subr.mxu0 0.0
    %212 = vmatpush1.msra.mxu0 %v103
    %213 = vmatprep.subr.mxu0 0.0
    %214 = vmatpush1.msra.mxu0 %v104
    %215 = vmatprep.subr.mxu0 0.0
    %216 = vmatpush1.msra.mxu0 %v105
    %217 = vmatprep.subr.mxu0 0.0
    %218 = vmatpush1.msra.mxu0 %v106
    %219 = vmatprep.subr.mxu0 0.0
    %220 = vmatpush1.msra.mxu0 %v107
    %221 = vmatprep.subr.mxu0 0.0
    %222 = vmatpush1.msra.mxu0 %v108
    %223 = vmatprep.subr.mxu0 0.0
    %224 = vmatpush1.msra.mxu0 0.0
    %225 = vmatprep.subr.mxu0 0.0
    %226 = vmatpush1.msra.mxu0 0.0
    %227 = vmatprep.subr.mxu0 0.0
    %228 = vmatpush1.msra.mxu0 0.0
    %229 = vmatprep.subr.mxu0 0.0
    %230 = vmatpush1.msra.mxu0 0.0
    %231 = vmatprep.subr.mxu0 0.0
    %232 = vmatpush1.msra.mxu0 0.0
    %233 = vmatprep.subr.mxu0 0.0
    %234 = vmatpush1.msra.mxu0 0.0
    %235 = vmatprep.subr.mxu0 0.0
    %236 = vmatpush1.msra.mxu0 0.0
    %237 = vmatprep.subr.mxu0 0.0
    %238 = vmatpush1.msra.mxu0 0.0
    %239 = vmatprep.subr.mxu0 0.0
    %240 = vmatpush1.msra.mxu0 0.0
    %241 = vmatprep.subr.mxu0 0.0
    %242 = vmatpush1.msra.mxu0 0.0
    %243 = vmatprep.subr.mxu0 0.0
    %244 = vmatpush1.msra.mxu0 0.0
    %245 = vmatprep.subr.mxu0 0.0
    %246 = vmatpush1.msra.mxu0 0.0
    %247 = vmatprep.subr.mxu0 0.0
    %248 = vmatpush1.msra.mxu0 0.0
    %249 = vmatprep.subr.mxu0 0.0
    %250 = vmatpush1.msra.mxu0 0.0
    %251 = vmatprep.subr.mxu0 0.0
    %252 = vmatpush1.msra.mxu0 0.0
    %253 = vmatprep.subr.mxu0 0.0
    %254 = vmatpush1.msra.mxu0 0.0
    %255 = vmatprep.mubr.f32.mxu0 0.0
    %256 = vmatmul.mubr.f32.gmra.mrb[0].mxu0 %v73
    %v257 = vpop.f32.mrb[0].mxu0
    %v258 = vadd.f32 0.0, %v257
    %v259 = vpop.f32.mrb[0].mxu0
    %260 = vdwg.mxu0
    %v261 = vadd.f32 %v183, %v258
    %v262 = vtanh.pop %v261
    %v263 = vxor.u32 %v261, 2147483648
    %v264 = vmul.f32 %v263, 1.442695
    %v265 = vpow.pop %v264
    %v266 = vadd.f32 %v265, 1.0
    %v267 = vrcp.pop %v266
    %v268 = vmul.f32 1.0, %v267
    %v269 = vsel %vm72, %v262, %v268
    %270 = vrot.lane.b32.xlu0 %v269, 64
    %v271 = vpop.permute.xlu0 %270
    %v272 = vmul.f32 %v269, %v271
    %v273 = vmul.f32 %v269, %v74
    %274 = vrot.lane.b32.xlu0 %v272, 32
    %v275 = vpop.permute.xlu0 %274
    %v276 = vadd.f32 %v273, %v275
    %v277 = vtanh.pop %v276
    %v278 = vmul.f32 %v277, %v271
    %279 = vst [vmem:[#allocation8] sm:$0x3] %v278
    %280 = vmatprep.subr.mxu0 0.0
    %281 = vmatpush1.msra.mxu0 %v93
    %282 = vmatprep.subr.mxu0 0.0
    %283 = vmatpush1.msra.mxu0 %v94
    %284 = vmatprep.subr.mxu0 0.0
    %285 = vmatpush1.msra.mxu0 %v95
    %286 = vmatprep.subr.mxu0 0.0
    %287 = vmatpush1.msra.mxu0 %v96
    %288 = vmatprep.subr.mxu0 0.0
    %289 = vmatpush1.msra.mxu0 %v97
    %290 = vmatprep.subr.mxu0 0.0
    %291 = vmatpush1.msra.mxu0 %v98
    %292 = vmatprep.subr.mxu0 0.0
    %293 = vmatpush1.msra.mxu0 %v99
    %294 = vmatprep.subr.mxu0 0.0
    %295 = vmatpush1.msra.mxu0 %v100
    %296 = vmatprep.subr.mxu0 0.0
    %297 = vmatpush1.msra.mxu0 %v101
    %298 = vmatprep.subr.mxu0 0.0
    %299 = vmatpush1.msra.mxu0 %v102
    %300 = vmatprep.subr.mxu0 0.0
    %301 = vmatpush1.msra.mxu0 %v103
    %302 = vmatprep.subr.mxu0 0.0
    %303 = vmatpush1.msra.mxu0 %v104
    %304 = vmatprep.subr.mxu0 0.0
    %305 = vmatpush1.msra.mxu0 %v105
    %306 = vmatprep.subr.mxu0 0.0
    %307 = vmatpush1.msra.mxu0 %v106
    %308 = vmatprep.subr.mxu0 0.0
    %309 = vmatpush1.msra.mxu0 %v107
    %310 = vmatprep.subr.mxu0 0.0
    %311 = vmatpush1.msra.mxu0 %v108
    %312 = vmatprep.subr.mxu0 0.0
    %313 = vmatpush1.msra.mxu0 0.0
    %314 = vmatprep.subr.mxu0 0.0
    %315 = vmatpush1.msra.mxu0 0.0
    %316 = vmatprep.subr.mxu0 0.0
    %317 = vmatpush1.msra.mxu0 0.0
    %318 = vmatprep.subr.mxu0 0.0
    %319 = vmatpush1.msra.mxu0 0.0
    %320 = vmatprep.subr.mxu0 0.0
    %321 = vmatpush1.msra.mxu0 0.0
    %322 = vmatprep.subr.mxu0 0.0
    %323 = vmatpush1.msra.mxu0 0.0
    %324 = vmatprep.subr.mxu0 0.0
    %325 = vmatpush1.msra.mxu0 0.0
    %326 = vmatprep.subr.mxu0 0.0
    %327 = vmatpush1.msra.mxu0 0.0
    %328 = vmatprep.subr.mxu0 0.0
    %329 = vmatpush1.msra.mxu0 0.0
    %330 = vmatprep.subr.mxu0 0.0
    %331 = vmatpush1.msra.mxu0 0.0
    %332 = vmatprep.subr.mxu0 0.0
    %333 = vmatpush1.msra.mxu0 0.0
    %334 = vmatprep.subr.mxu0 0.0
    %335 = vmatpush1.msra.mxu0 0.0
    %336 = vmatprep.subr.mxu0 0.0
    %337 = vmatpush1.msra.mxu0 0.0
    %338 = vmatprep.subr.mxu0 0.0
    %339 = vmatpush1.msra.mxu0 0.0
    %340 = vmatprep.subr.mxu0 0.0
    %341 = vmatpush1.msra.mxu0 0.0
    %342 = vmatprep.subr.mxu0 0.0
    %343 = vmatpush1.msra.mxu0 0.0
    %344 = vmatprep.mubr.f32.mxu0 0.0
    %345 = vmatmul.mubr.f32.gmra.mrb[0].mxu0 %v278
    %v346 = vpop.f32.mrb[0].mxu0
    %v347 = vadd.f32 0.0, %v346
    %v348 = vpop.f32.mrb[0].mxu0
    %349 = vdwg.mxu0
    %v351 = vrot.slane %v347, 6
    %v353 = vadd.f32 %v183, %v351
    %v354 = vtanh.pop %v353
    %v355 = vxor.u32 %v353, 2147483648
    %v356 = vmul.f32 %v355, 1.442695
    %v357 = vpow.pop %v356
    %v358 = vadd.f32 %v357, 1.0
    %v359 = vrcp.pop %v358
    %v360 = vmul.f32 1.0, %v359
    %v361 = vsel %vm72, %v354, %v360
    %v363 = vrot.slane %v361, 2
    %365 = vrot.lane.b32.xlu0 %v363, 64
    %v366 = vpop.permute.xlu0 %365
    %v368 = vrot.slane %v366, 6
    %v370 = vmul.f32 %v361, %v368
    %v372 = vrot.slane %v276, 6
    %v374 = vmul.f32 %v361, %v372
    %v376 = vrot.slane %v370, 2
    %378 = vrot.lane.b32.xlu0 %v376, 32
    %v379 = vpop.permute.xlu0 %378
    %v381 = vrot.slane %v379, 6
    %v383 = vadd.f32 %v374, %v381
    %v384 = vtanh.pop %v383
    %v385 = vmul.f32 %v384, %v368
    %386 = vst [vmem:[#allocation8] sm:$0xc] %v385
    %v388 = vrot.slane %v385, 2
    %390 = vmatprep.subr.mxu0 0.0
    %391 = vmatpush1.msra.mxu0 %v93
    %392 = vmatprep.subr.mxu0 0.0
    %393 = vmatpush1.msra.mxu0 %v94
    %394 = vmatprep.subr.mxu0 0.0
    %395 = vmatpush1.msra.mxu0 %v95
    %396 = vmatprep.subr.mxu0 0.0
    %397 = vmatpush1.msra.mxu0 %v96
    %398 = vmatprep.subr.mxu0 0.0
    %399 = vmatpush1.msra.mxu0 %v97
    %400 = vmatprep.subr.mxu0 0.0
    %401 = vmatpush1.msra.mxu0 %v98
    %402 = vmatprep.subr.mxu0 0.0
    %403 = vmatpush1.msra.mxu0 %v99
    %404 = vmatprep.subr.mxu0 0.0
    %405 = vmatpush1.msra.mxu0 %v100
    %406 = vmatprep.subr.mxu0 0.0
    %407 = vmatpush1.msra.mxu0 %v101
    %408 = vmatprep.subr.mxu0 0.0
    %409 = vmatpush1.msra.mxu0 %v102
    %410 = vmatprep.subr.mxu0 0.0
    %411 = vmatpush1.msra.mxu0 %v103
    %412 = vmatprep.subr.mxu0 0.0
    %413 = vmatpush1.msra.mxu0 %v104
    %414 = vmatprep.subr.mxu0 0.0
    %415 = vmatpush1.msra.mxu0 %v105
    %416 = vmatprep.subr.mxu0 0.0
    %417 = vmatpush1.msra.mxu0 %v106
    %418 = vmatprep.subr.mxu0 0.0
    %419 = vmatpush1.msra.mxu0 %v107
    %420 = vmatprep.subr.mxu0 0.0
    %421 = vmatpush1.msra.mxu0 %v108
    %422 = vmatprep.subr.mxu0 0.0
    %423 = vmatpush1.msra.mxu0 0.0
    %424 = vmatprep.subr.mxu0 0.0
    %425 = vmatpush1.msra.mxu0 0.0
    %426 = vmatprep.subr.mxu0 0.0
    %427 = vmatpush1.msra.mxu0 0.0
    %428 = vmatprep.subr.mxu0 0.0
    %429 = vmatpush1.msra.mxu0 0.0
    %430 = vmatprep.subr.mxu0 0.0
    %431 = vmatpush1.msra.mxu0 0.0
    %432 = vmatprep.subr.mxu0 0.0
    %433 = vmatpush1.msra.mxu0 0.0
    %434 = vmatprep.subr.mxu0 0.0
    %435 = vmatpush1.msra.mxu0 0.0
    %436 = vmatprep.subr.mxu0 0.0
    %437 = vmatpush1.msra.mxu0 0.0
    %438 = vmatprep.subr.mxu0 0.0
    %439 = vmatpush1.msra.mxu0 0.0
    %440 = vmatprep.subr.mxu0 0.0
    %441 = vmatpush1.msra.mxu0 0.0
    %442 = vmatprep.subr.mxu0 0.0
    %443 = vmatpush1.msra.mxu0 0.0
    %444 = vmatprep.subr.mxu0 0.0
    %445 = vmatpush1.msra.mxu0 0.0
    %446 = vmatprep.subr.mxu0 0.0
    %447 = vmatpush1.msra.mxu0 0.0
    %448 = vmatprep.subr.mxu0 0.0
    %449 = vmatpush1.msra.mxu0 0.0
    %450 = vmatprep.subr.mxu0 0.0
    %451 = vmatpush1.msra.mxu0 0.0
    %452 = vmatprep.subr.mxu0 0.0
    %453 = vmatpush1.msra.mxu0 0.0
    %454 = vmatprep.mubr.f32.mxu0 0.0
    %455 = vmatmul.mubr.f32.gmra.mrb[0].mxu0 %v388
    %v456 = vpop.f32.mrb[0].mxu0
    %v457 = vadd.f32 0.0, %v456
    %v458 = vpop.f32.mrb[0].mxu0
    %459 = vdwg.mxu0
    %v461 = vrot.slane %v457, 4
    %v463 = vadd.f32 %v183, %v461
    %v464 = vtanh.pop %v463
    %v465 = vxor.u32 %v463, 2147483648
    %v466 = vmul.f32 %v465, 1.442695
    %v467 = vpow.pop %v466
    %v468 = vadd.f32 %v467, 1.0
    %v469 = vrcp.pop %v468
    %v470 = vmul.f32 1.0, %v469
    %v471 = vsel %vm72, %v464, %v470
    %v473 = vrot.slane %v471, 4
    %475 = vrot.lane.b32.xlu0 %v473, 64
    %v476 = vpop.permute.xlu0 %475
    %v478 = vrot.slane %v476, 4
    %v480 = vmul.f32 %v471, %v478
    %v482 = vrot.slane %v383, 6
    %v484 = vmul.f32 %v471, %v482
    %v486 = vrot.slane %v480, 4
    %488 = vrot.lane.b32.xlu0 %v486, 32
    %v489 = vpop.permute.xlu0 %488
    %v491 = vrot.slane %v489, 4
    %v493 = vadd.f32 %v484, %v491
    %v494 = vtanh.pop %v493
    %v495 = vmul.f32 %v494, %v478
    %496 = vst [vmem:[#allocation8] sm:$0x30] %v495
    %v498 = vrot.slane %v495, 4
    %500 = vmatprep.subr.mxu0 0.0
    %501 = vmatpush1.msra.mxu0 %v93
    %502 = vmatprep.subr.mxu0 0.0
    %503 = vmatpush1.msra.mxu0 %v94
    %504 = vmatprep.subr.mxu0 0.0
    %505 = vmatpush1.msra.mxu0 %v95
    %506 = vmatprep.subr.mxu0 0.0
    %507 = vmatpush1.msra.mxu0 %v96
    %508 = vmatprep.subr.mxu0 0.0
    %509 = vmatpush1.msra.mxu0 %v97
    %510 = vmatprep.subr.mxu0 0.0
    %511 = vmatpush1.msra.mxu0 %v98
    %512 = vmatprep.subr.mxu0 0.0
    %513 = vmatpush1.msra.mxu0 %v99
    %514 = vmatprep.subr.mxu0 0.0
    %515 = vmatpush1.msra.mxu0 %v100
    %516 = vmatprep.subr.mxu0 0.0
    %517 = vmatpush1.msra.mxu0 %v101
    %518 = vmatprep.subr.mxu0 0.0
    %519 = vmatpush1.msra.mxu0 %v102
    %520 = vmatprep.subr.mxu0 0.0
    %521 = vmatpush1.msra.mxu0 %v103
    %522 = vmatprep.subr.mxu0 0.0
    %523 = vmatpush1.msra.mxu0 %v104
    %524 = vmatprep.subr.mxu0 0.0
    %525 = vmatpush1.msra.mxu0 %v105
    %526 = vmatprep.subr.mxu0 0.0
    %527 = vmatpush1.msra.mxu0 %v106
    %528 = vmatprep.subr.mxu0 0.0
    %529 = vmatpush1.msra.mxu0 %v107
    %530 = vmatprep.subr.mxu0 0.0
    %531 = vmatpush1.msra.mxu0 %v108
    %532 = vmatprep.subr.mxu0 0.0
    %533 = vmatpush1.msra.mxu0 0.0
    %534 = vmatprep.subr.mxu0 0.0
    %535 = vmatpush1.msra.mxu0 0.0
    %536 = vmatprep.subr.mxu0 0.0
    %537 = vmatpush1.msra.mxu0 0.0
    %538 = vmatprep.subr.mxu0 0.0
    %539 = vmatpush1.msra.mxu0 0.0
    %540 = vmatprep.subr.mxu0 0.0
    %541 = vmatpush1.msra.mxu0 0.0
    %542 = vmatprep.subr.mxu0 0.0
    %543 = vmatpush1.msra.mxu0 0.0
    %544 = vmatprep.subr.mxu0 0.0
    %545 = vmatpush1.msra.mxu0 0.0
    %546 = vmatprep.subr.mxu0 0.0
    %547 = vmatpush1.msra.mxu0 0.0
    %548 = vmatprep.subr.mxu0 0.0
    %549 = vmatpush1.msra.mxu0 0.0
    %550 = vmatprep.subr.mxu0 0.0
    %551 = vmatpush1.msra.mxu0 0.0
    %552 = vmatprep.subr.mxu0 0.0
    %553 = vmatpush1.msra.mxu0 0.0
    %554 = vmatprep.subr.mxu0 0.0
    %555 = vmatpush1.msra.mxu0 0.0
    %556 = vmatprep.subr.mxu0 0.0
    %557 = vmatpush1.msra.mxu0 0.0
    %558 = vmatprep.subr.mxu0 0.0
    %559 = vmatpush1.msra.mxu0 0.0
    %560 = vmatprep.subr.mxu0 0.0
    %561 = vmatpush1.msra.mxu0 0.0
    %562 = vmatprep.subr.mxu0 0.0
    %563 = vmatpush1.msra.mxu0 0.0
    %564 = vmatprep.mubr.f32.mxu0 0.0
    %565 = vmatmul.mubr.f32.gmra.mrb[0].mxu0 %v498
    %v566 = vpop.f32.mrb[0].mxu0
    %v567 = vadd.f32 0.0, %v566
    %v568 = vpop.f32.mrb[0].mxu0
    %569 = vdwg.mxu0
    %v571 = vrot.slane %v567, 2
    %v573 = vadd.f32 %v183, %v571
    %v574 = vtanh.pop %v573
    %v575 = vxor.u32 %v573, 2147483648
    %v576 = vmul.f32 %v575, 1.442695
    %v577 = vpow.pop %v576
    %v578 = vadd.f32 %v577, 1.0
    %v579 = vrcp.pop %v578
    %v580 = vmul.f32 1.0, %v579
    %v581 = vsel %vm72, %v574, %v580
    %v583 = vrot.slane %v581, 6
    %585 = vrot.lane.b32.xlu0 %v583, 64
    %v586 = vpop.permute.xlu0 %585
    %v588 = vrot.slane %v586, 2
    %v590 = vmul.f32 %v581, %v588
    %v592 = vrot.slane %v493, 6
    %v594 = vmul.f32 %v581, %v592
    %v596 = vrot.slane %v590, 6
    %598 = vrot.lane.b32.xlu0 %v596, 32
    %v599 = vpop.permute.xlu0 %598
    %v601 = vrot.slane %v599, 2
    %v603 = vadd.f32 %v594, %v601
    %v604 = vtanh.pop %v603
    %v605 = vmul.f32 %v604, %v588
    %606 = vst [vmem:[#allocation8] sm:$0xc0] %v605
    %v608 = vrot.slane %v605, 6
    %610 = vmatprep.subr.mxu0 0.0
    %611 = vmatpush1.msra.mxu0 %v93
    %612 = vmatprep.subr.mxu0 0.0
    %613 = vmatpush1.msra.mxu0 %v94
    %614 = vmatprep.subr.mxu0 0.0
    %615 = vmatpush1.msra.mxu0 %v95
    %616 = vmatprep.subr.mxu0 0.0
    %617 = vmatpush1.msra.mxu0 %v96
    %618 = vmatprep.subr.mxu0 0.0
    %619 = vmatpush1.msra.mxu0 %v97
    %620 = vmatprep.subr.mxu0 0.0
    %621 = vmatpush1.msra.mxu0 %v98
    %622 = vmatprep.subr.mxu0 0.0
    %623 = vmatpush1.msra.mxu0 %v99
    %624 = vmatprep.subr.mxu0 0.0
    %625 = vmatpush1.msra.mxu0 %v100
    %626 = vmatprep.subr.mxu0 0.0
    %627 = vmatpush1.msra.mxu0 %v101
    %628 = vmatprep.subr.mxu0 0.0
    %629 = vmatpush1.msra.mxu0 %v102
    %630 = vmatprep.subr.mxu0 0.0
    %631 = vmatpush1.msra.mxu0 %v103
    %632 = vmatprep.subr.mxu0 0.0
    %633 = vmatpush1.msra.mxu0 %v104
    %634 = vmatprep.subr.mxu0 0.0
    %635 = vmatpush1.msra.mxu0 %v105
    %636 = vmatprep.subr.mxu0 0.0
    %637 = vmatpush1.msra.mxu0 %v106
    %638 = vmatprep.subr.mxu0 0.0
    %639 = vmatpush1.msra.mxu0 %v107
    %640 = vmatprep.subr.mxu0 0.0
    %641 = vmatpush1.msra.mxu0 %v108
    %642 = vmatprep.subr.mxu0 0.0
    %643 = vmatpush1.msra.mxu0 0.0
    %644 = vmatprep.subr.mxu0 0.0
    %645 = vmatpush1.msra.mxu0 0.0
    %646 = vmatprep.subr.mxu0 0.0
    %647 = vmatpush1.msra.mxu0 0.0
    %648 = vmatprep.subr.mxu0 0.0
    %649 = vmatpush1.msra.mxu0 0.0
    %650 = vmatprep.subr.mxu0 0.0
    %651 = vmatpush1.msra.mxu0 0.0
    %652 = vmatprep.subr.mxu0 0.0
    %653 = vmatpush1.msra.mxu0 0.0
    %654 = vmatprep.subr.mxu0 0.0
    %655 = vmatpush1.msra.mxu0 0.0
    %656 = vmatprep.subr.mxu0 0.0
    %657 = vmatpush1.msra.mxu0 0.0
    %658 = vmatprep.subr.mxu0 0.0
    %659 = vmatpush1.msra.mxu0 0.0
    %660 = vmatprep.subr.mxu0 0.0
    %661 = vmatpush1.msra.mxu0 0.0
    %662 = vmatprep.subr.mxu0 0.0
    %663 = vmatpush1.msra.mxu0 0.0
    %664 = vmatprep.subr.mxu0 0.0
    %665 = vmatpush1.msra.mxu0 0.0
    %666 = vmatprep.subr.mxu0 0.0
    %667 = vmatpush1.msra.mxu0 0.0
    %668 = vmatprep.subr.mxu0 0.0
    %669 = vmatpush1.msra.mxu0 0.0
    %670 = vmatprep.subr.mxu0 0.0
    %671 = vmatpush1.msra.mxu0 0.0
    %672 = vmatprep.subr.mxu0 0.0
    %673 = vmatpush1.msra.mxu0 0.0
    %674 = vmatprep.mubr.f32.mxu0 0.0
    %675 = vmatmul.mubr.f32.gmra.mrb[0].mxu0 %v608
    %v676 = vpop.f32.mrb[0].mxu0
    %v677 = vadd.f32 0.0, %v676
    %v678 = vpop.f32.mrb[0].mxu0
    %679 = vdwg.mxu0
    %v680 = vadd.f32 %v188, %v677
    %v681 = vtanh.pop %v680
    %v682 = vxor.u32 %v680, 2147483648
    %v683 = vmul.f32 %v682, 1.442695
    %v684 = vpow.pop %v683
    %v685 = vadd.f32 %v684, 1.0
    %v686 = vrcp.pop %v685
    %v687 = vmul.f32 1.0, %v686
    %v688 = vsel %vm72, %v681, %v687
    %689 = vrot.lane.b32.xlu0 %v688, 64
    %v690 = vpop.permute.xlu0 %689
    %v691 = vmul.f32 %v688, %v690
    %v693 = vrot.slane %v603, 6
    %v695 = vmul.f32 %v688, %v693
    %696 = vrot.lane.b32.xlu0 %v691, 32
    %v697 = vpop.permute.xlu0 %696
    %v698 = vadd.f32 %v695, %v697
    %v699 = vtanh.pop %v698
    %v700 = vmul.f32 %v699, %v690
    %701 = vst [vmem:[#allocation8 + $0x8] sm:$0x3] %v700
    %702 = vmatprep.subr.mxu0 0.0
    %703 = vmatpush1.msra.mxu0 %v93
    %704 = vmatprep.subr.mxu0 0.0
    %705 = vmatpush1.msra.mxu0 %v94
    %706 = vmatprep.subr.mxu0 0.0
    %707 = vmatpush1.msra.mxu0 %v95
    %708 = vmatprep.subr.mxu0 0.0
    %709 = vmatpush1.msra.mxu0 %v96
    %710 = vmatprep.subr.mxu0 0.0
    %711 = vmatpush1.msra.mxu0 %v97
    %712 = vmatprep.subr.mxu0 0.0
    %713 = vmatpush1.msra.mxu0 %v98
    %714 = vmatprep.subr.mxu0 0.0
    %715 = vmatpush1.msra.mxu0 %v99
    %716 = vmatprep.subr.mxu0 0.0
    %717 = vmatpush1.msra.mxu0 %v100
    %718 = vmatprep.subr.mxu0 0.0
    %719 = vmatpush1.msra.mxu0 %v101
    %720 = vmatprep.subr.mxu0 0.0
    %721 = vmatpush1.msra.mxu0 %v102
    %722 = vmatprep.subr.mxu0 0.0
    %723 = vmatpush1.msra.mxu0 %v103
    %724 = vmatprep.subr.mxu0 0.0
    %725 = vmatpush1.msra.mxu0 %v104
    %726 = vmatprep.subr.mxu0 0.0
    %727 = vmatpush1.msra.mxu0 %v105
    %728 = vmatprep.subr.mxu0 0.0
    %729 = vmatpush1.msra.mxu0 %v106
    %730 = vmatprep.subr.mxu0 0.0
    %731 = vmatpush1.msra.mxu0 %v107
    %732 = vmatprep.subr.mxu0 0.0
    %733 = vmatpush1.msra.mxu0 %v108
    %734 = vmatprep.subr.mxu0 0.0
    %735 = vmatpush1.msra.mxu0 0.0
    %736 = vmatprep.subr.mxu0 0.0
    %737 = vmatpush1.msra.mxu0 0.0
    %738 = vmatprep.subr.mxu0 0.0
    %739 = vmatpush1.msra.mxu0 0.0
    %740 = vmatprep.subr.mxu0 0.0
    %741 = vmatpush1.msra.mxu0 0.0
    %742 = vmatprep.subr.mxu0 0.0
    %743 = vmatpush1.msra.mxu0 0.0
    %744 = vmatprep.subr.mxu0 0.0
    %745 = vmatpush1.msra.mxu0 0.0
    %746 = vmatprep.subr.mxu0 0.0
    %747 = vmatpush1.msra.mxu0 0.0
    %748 = vmatprep.subr.mxu0 0.0
    %749 = vmatpush1.msra.mxu0 0.0
    %750 = vmatprep.subr.mxu0 0.0
    %751 = vmatpush1.msra.mxu0 0.0
    %752 = vmatprep.subr.mxu0 0.0
    %753 = vmatpush1.msra.mxu0 0.0
    %754 = vmatprep.subr.mxu0 0.0
    %755 = vmatpush1.msra.mxu0 0.0
    %756 = vmatprep.subr.mxu0 0.0
    %757 = vmatpush1.msra.mxu0 0.0
    %758 = vmatprep.subr.mxu0 0.0
    %759 = vmatpush1.msra.mxu0 0.0
    %760 = vmatprep.subr.mxu0 0.0
    %761 = vmatpush1.msra.mxu0 0.0
    %762 = vmatprep.subr.mxu0 0.0
    %763 = vmatpush1.msra.mxu0 0.0
    %764 = vmatprep.subr.mxu0 0.0
    %765 = vmatpush1.msra.mxu0 0.0
    %766 = vmatprep.mubr.f32.mxu0 0.0
    %767 = vmatmul.mubr.f32.gmra.mrb[0].mxu0 %v700
    %v768 = vpop.f32.mrb[0].mxu0
    %v769 = vadd.f32 0.0, %v768
    %v770 = vpop.f32.mrb[0].mxu0
    %771 = vdwg.mxu0
    %v773 = vrot.slane %v769, 6
    %v775 = vadd.f32 %v188, %v773
    %v776 = vtanh.pop %v775
    %v777 = vxor.u32 %v775, 2147483648
    %v778 = vmul.f32 %v777, 1.442695
    %v779 = vpow.pop %v778
    %v780 = vadd.f32 %v779, 1.0
    %v781 = vrcp.pop %v780
    %v782 = vmul.f32 1.0, %v781
    %v783 = vsel %vm72, %v776, %v782
    %v785 = vrot.slane %v783, 2
    %787 = vrot.lane.b32.xlu0 %v785, 64
    %v788 = vpop.permute.xlu0 %787
    %v790 = vrot.slane %v788, 6
    %v792 = vmul.f32 %v783, %v790
    %v794 = vrot.slane %v698, 6
    %v796 = vmul.f32 %v783, %v794
    %v798 = vrot.slane %v792, 2
    %800 = vrot.lane.b32.xlu0 %v798, 32
    %v801 = vpop.permute.xlu0 %800
    %v803 = vrot.slane %v801, 6
    %v805 = vadd.f32 %v796, %v803
    %v806 = vtanh.pop %v805
    %v807 = vmul.f32 %v806, %v790
    %808 = vst [vmem:[#allocation8 + $0x8] sm:$0xc] %v807
    %v810 = vrot.slane %v807, 2
    %812 = vmatprep.subr.mxu0 0.0
    %813 = vmatpush1.msra.mxu0 %v93
    %814 = vmatprep.subr.mxu0 0.0
    %815 = vmatpush1.msra.mxu0 %v94
    %816 = vmatprep.subr.mxu0 0.0
    %817 = vmatpush1.msra.mxu0 %v95
    %818 = vmatprep.subr.mxu0 0.0
    %819 = vmatpush1.msra.mxu0 %v96
    %820 = vmatprep.subr.mxu0 0.0
    %821 = vmatpush1.msra.mxu0 %v97
    %822 = vmatprep.subr.mxu0 0.0
    %823 = vmatpush1.msra.mxu0 %v98
    %824 = vmatprep.subr.mxu0 0.0
    %825 = vmatpush1.msra.mxu0 %v99
    %826 = vmatprep.subr.mxu0 0.0
    %827 = vmatpush1.msra.mxu0 %v100
    %828 = vmatprep.subr.mxu0 0.0
    %829 = vmatpush1.msra.mxu0 %v101
    %830 = vmatprep.subr.mxu0 0.0
    %831 = vmatpush1.msra.mxu0 %v102
    %832 = vmatprep.subr.mxu0 0.0
    %833 = vmatpush1.msra.mxu0 %v103
    %834 = vmatprep.subr.mxu0 0.0
    %835 = vmatpush1.msra.mxu0 %v104
    %836 = vmatprep.subr.mxu0 0.0
    %837 = vmatpush1.msra.mxu0 %v105
    %838 = vmatprep.subr.mxu0 0.0
    %839 = vmatpush1.msra.mxu0 %v106
    %840 = vmatprep.subr.mxu0 0.0
    %841 = vmatpush1.msra.mxu0 %v107
    %842 = vmatprep.subr.mxu0 0.0
    %843 = vmatpush1.msra.mxu0 %v108
    %844 = vmatprep.subr.mxu0 0.0
    %845 = vmatpush1.msra.mxu0 0.0
    %846 = vmatprep.subr.mxu0 0.0
    %847 = vmatpush1.msra.mxu0 0.0
    %848 = vmatprep.subr.mxu0 0.0
    %849 = vmatpush1.msra.mxu0 0.0
    %850 = vmatprep.subr.mxu0 0.0
    %851 = vmatpush1.msra.mxu0 0.0
    %852 = vmatprep.subr.mxu0 0.0
    %853 = vmatpush1.msra.mxu0 0.0
    %854 = vmatprep.subr.mxu0 0.0
    %855 = vmatpush1.msra.mxu0 0.0
    %856 = vmatprep.subr.mxu0 0.0
    %857 = vmatpush1.msra.mxu0 0.0
    %858 = vmatprep.subr.mxu0 0.0
    %859 = vmatpush1.msra.mxu0 0.0
    %860 = vmatprep.subr.mxu0 0.0
    %861 = vmatpush1.msra.mxu0 0.0
    %862 = vmatprep.subr.mxu0 0.0
    %863 = vmatpush1.msra.mxu0 0.0
    %864 = vmatprep.subr.mxu0 0.0
    %865 = vmatpush1.msra.mxu0 0.0
    %866 = vmatprep.subr.mxu0 0.0
    %867 = vmatpush1.msra.mxu0 0.0
    %868 = vmatprep.subr.mxu0 0.0
    %869 = vmatpush1.msra.mxu0 0.0
    %870 = vmatprep.subr.mxu0 0.0
    %871 = vmatpush1.msra.mxu0 0.0
    %872 = vmatprep.subr.mxu0 0.0
    %873 = vmatpush1.msra.mxu0 0.0
    %874 = vmatprep.subr.mxu0 0.0
    %875 = vmatpush1.msra.mxu0 0.0
    %876 = vmatprep.mubr.f32.mxu0 0.0
    %877 = vmatmul.mubr.f32.gmra.mrb[0].mxu0 %v810
    %v878 = vpop.f32.mrb[0].mxu0
    %v879 = vadd.f32 0.0, %v878
    %v880 = vpop.f32.mrb[0].mxu0
    %881 = vdwg.mxu0
    %v883 = vrot.slane %v879, 4
    %v885 = vadd.f32 %v188, %v883
    %v886 = vtanh.pop %v885
    %v887 = vxor.u32 %v885, 2147483648
    %v888 = vmul.f32 %v887, 1.442695
    %v889 = vpow.pop %v888
    %v890 = vadd.f32 %v889, 1.0
    %v891 = vrcp.pop %v890
    %v892 = vmul.f32 1.0, %v891
    %v893 = vsel %vm72, %v886, %v892
    %v895 = vrot.slane %v893, 4
    %897 = vrot.lane.b32.xlu0 %v895, 64
    %v898 = vpop.permute.xlu0 %897
    %v900 = vrot.slane %v898, 4
    %v902 = vmul.f32 %v893, %v900
    %v904 = vrot.slane %v805, 6
    %v906 = vmul.f32 %v893, %v904
    %v908 = vrot.slane %v902, 4
    %910 = vrot.lane.b32.xlu0 %v908, 32
    %v911 = vpop.permute.xlu0 %910
    %v913 = vrot.slane %v911, 4
    %v915 = vadd.f32 %v906, %v913
    %v916 = vtanh.pop %v915
    %v917 = vmul.f32 %v916, %v900
    %918 = vst [vmem:[#allocation8 + $0x8] sm:$0x30] %v917
    %v920 = vrot.slane %v917, 4
    %922 = vmatprep.subr.mxu0 0.0
    %923 = vmatpush1.msra.mxu0 %v93
    %924 = vmatprep.subr.mxu0 0.0
    %925 = vmatpush1.msra.mxu0 %v94
    %926 = vmatprep.subr.mxu0 0.0
    %927 = vmatpush1.msra.mxu0 %v95
    %928 = vmatprep.subr.mxu0 0.0
    %929 = vmatpush1.msra.mxu0 %v96
    %930 = vmatprep.subr.mxu0 0.0
    %931 = vmatpush1.msra.mxu0 %v97
    %932 = vmatprep.subr.mxu0 0.0
    %933 = vmatpush1.msra.mxu0 %v98
    %934 = vmatprep.subr.mxu0 0.0
    %935 = vmatpush1.msra.mxu0 %v99
    %936 = vmatprep.subr.mxu0 0.0
    %937 = vmatpush1.msra.mxu0 %v100
    %938 = vmatprep.subr.mxu0 0.0
    %939 = vmatpush1.msra.mxu0 %v101
    %940 = vmatprep.subr.mxu0 0.0
    %941 = vmatpush1.msra.mxu0 %v102
    %942 = vmatprep.subr.mxu0 0.0
    %943 = vmatpush1.msra.mxu0 %v103
    %944 = vmatprep.subr.mxu0 0.0
    %945 = vmatpush1.msra.mxu0 %v104
    %946 = vmatprep.subr.mxu0 0.0
    %947 = vmatpush1.msra.mxu0 %v105
    %948 = vmatprep.subr.mxu0 0.0
    %949 = vmatpush1.msra.mxu0 %v106
    %950 = vmatprep.subr.mxu0 0.0
    %951 = vmatpush1.msra.mxu0 %v107
    %952 = vmatprep.subr.mxu0 0.0
    %953 = vmatpush1.msra.mxu0 %v108
    %954 = vmatprep.subr.mxu0 0.0
    %955 = vmatpush1.msra.mxu0 0.0
    %956 = vmatprep.subr.mxu0 0.0
    %957 = vmatpush1.msra.mxu0 0.0
    %958 = vmatprep.subr.mxu0 0.0
    %959 = vmatpush1.msra.mxu0 0.0
    %960 = vmatprep.subr.mxu0 0.0
    %961 = vmatpush1.msra.mxu0 0.0
    %962 = vmatprep.subr.mxu0 0.0
    %963 = vmatpush1.msra.mxu0 0.0
    %964 = vmatprep.subr.mxu0 0.0
    %965 = vmatpush1.msra.mxu0 0.0
    %966 = vmatprep.subr.mxu0 0.0
    %967 = vmatpush1.msra.mxu0 0.0
    %968 = vmatprep.subr.mxu0 0.0
    %969 = vmatpush1.msra.mxu0 0.0
    %970 = vmatprep.subr.mxu0 0.0
    %971 = vmatpush1.msra.mxu0 0.0
    %972 = vmatprep.subr.mxu0 0.0
    %973 = vmatpush1.msra.mxu0 0.0
    %974 = vmatprep.subr.mxu0 0.0
    %975 = vmatpush1.msra.mxu0 0.0
    %976 = vmatprep.subr.mxu0 0.0
    %977 = vmatpush1.msra.mxu0 0.0
    %978 = vmatprep.subr.mxu0 0.0
    %979 = vmatpush1.msra.mxu0 0.0
    %980 = vmatprep.subr.mxu0 0.0
    %981 = vmatpush1.msra.mxu0 0.0
    %982 = vmatprep.subr.mxu0 0.0
    %983 = vmatpush1.msra.mxu0 0.0
    %984 = vmatprep.subr.mxu0 0.0
    %985 = vmatpush1.msra.mxu0 0.0
    %986 = vmatprep.mubr.f32.mxu0 0.0
    %987 = vmatmul.mubr.f32.gmra.mrb[0].mxu0 %v920
    %v988 = vpop.f32.mrb[0].mxu0
    %v989 = vadd.f32 0.0, %v988
    %v990 = vpop.f32.mrb[0].mxu0
    %991 = vdwg.mxu0
    %v993 = vrot.slane %v989, 2
    %v995 = vadd.f32 %v188, %v993
    %v996 = vtanh.pop %v995
    %v997 = vxor.u32 %v995, 2147483648
    %v998 = vmul.f32 %v997, 1.442695
    %v999 = vpow.pop %v998
    %v1000 = vadd.f32 %v999, 1.0
    %v1001 = vrcp.pop %v1000
    %v1002 = vmul.f32 1.0, %v1001
    %v1003 = vsel %vm72, %v996, %v1002
    %v1005 = vrot.slane %v1003, 6
    %1007 = vrot.lane.b32.xlu0 %v1005, 64
    %v1008 = vpop.permute.xlu0 %1007
    %v1010 = vrot.slane %v1008, 2
    %v1012 = vmul.f32 %v1003, %v1010
    %v1014 = vrot.slane %v915, 6
    %v1016 = vmul.f32 %v1003, %v1014
    %v1018 = vrot.slane %v1012, 6
    %1020 = vrot.lane.b32.xlu0 %v1018, 32
    %v1021 = vpop.permute.xlu0 %1020
    %v1023 = vrot.slane %v1021, 2
    %v1025 = vadd.f32 %v1016, %v1023
    %v1026 = vtanh.pop %v1025
    %v1027 = vmul.f32 %v1026, %v1010
    %1028 = vst [vmem:[#allocation8 + $0x8] sm:$0xc0] %v1027
    %v1029 = vld [vmem:[#allocation8] sm:$0xff]
    %v1030 = vld [vmem:[#allocation8 + $0x8] sm:$0xff]
    %s1031 = scalar_lea.vmem [#allocation5], 128
    %v1032 = vld [vmem:[%s1031] sm:$0xff]
    %v1033 = vld [vmem:[%s1031 + $0x8] sm:$0xff]
    %v1034 = vld [vmem:[%s1031 + $0x10] sm:$0xff]
    %v1035 = vld [vmem:[%s1031 + $0x18] sm:$0xff]
    %v1036 = vld [vmem:[%s1031 + $0x20] sm:$0xff]
    %v1037 = vld [vmem:[%s1031 + $0x28] sm:$0xff]
    %v1038 = vld [vmem:[%s1031 + $0x30] sm:$0xff]
    %v1039 = vld [vmem:[%s1031 + $0x38] sm:$0xff]
    %v1040 = vld [vmem:[%s1031 + $0x40] sm:$0xff]
    %v1041 = vld [vmem:[%s1031 + $0x48] sm:$0xff]
    %v1042 = vld [vmem:[%s1031 + $0x50] sm:$0xff]
    %v1043 = vld [vmem:[%s1031 + $0x58] sm:$0xff]
    %v1044 = vld [vmem:[%s1031 + $0x60] sm:$0xff]
    %v1045 = vld [vmem:[%s1031 + $0x68] sm:$0xff]
    %v1046 = vld [vmem:[%s1031 + $0x70] sm:$0xff]
    %v1047 = vld [vmem:[%s1031 + $0x78] sm:$0xff]
    %s1048 = scalar_lea.vmem [#allocation7], 128
    %v1049 = vld [vmem:[%s1048] sm:$0xff]
    %v1050 = vld [vmem:[%s1048 + $0x8] sm:$0xff]
    %v1051 = vld [vmem:[%s1048 + $0x10] sm:$0xff]
    %v1052 = vld [vmem:[%s1048 + $0x18] sm:$0xff]
    %v1053 = vld [vmem:[%s1048 + $0x20] sm:$0xff]
    %v1054 = vld [vmem:[%s1048 + $0x28] sm:$0xff]
    %v1055 = vld [vmem:[%s1048 + $0x30] sm:$0xff]
    %v1056 = vld [vmem:[%s1048 + $0x38] sm:$0xff]
    %v1057 = vld [vmem:[%s1048 + $0x40] sm:$0xff]
    %v1058 = vld [vmem:[%s1048 + $0x48] sm:$0xff]
    %v1059 = vld [vmem:[%s1048 + $0x50] sm:$0xff]
    %v1060 = vld [vmem:[%s1048 + $0x58] sm:$0xff]
    %v1061 = vld [vmem:[%s1048 + $0x60] sm:$0xff]
    %v1062 = vld [vmem:[%s1048 + $0x68] sm:$0xff]
    %v1063 = vld [vmem:[%s1048 + $0x70] sm:$0xff]
    %v1064 = vld [vmem:[%s1048 + $0x78] sm:$0xff]
    %s1065 = scalar_lea.vmem %s5, 1
    %v1066 = vld [vmem:[%s1065] sm:$0x1]
    %v1068 = vlaneseq
    %v1069 = vshrl.u32 %v1068, 7
    %v1070 = vsub.s32 0, %v1069
    %v1071 = vrot.slane %v1066, %v1070
    %1073 = vmatprep.subr.mxu0 0.0
    %1074 = vmatpush1.msra.mxu0 %v1032
    %1075 = vmatprep.subr.mxu0 0.0
    %1076 = vmatpush1.msra.mxu0 %v1033
    %1077 = vmatprep.subr.mxu0 0.0
    %1078 = vmatpush1.msra.mxu0 %v1034
    %1079 = vmatprep.subr.mxu0 0.0
    %1080 = vmatpush1.msra.mxu0 %v1035
    %1081 = vmatprep.subr.mxu0 0.0
    %1082 = vmatpush1.msra.mxu0 %v1036
    %1083 = vmatprep.subr.mxu0 0.0
    %1084 = vmatpush1.msra.mxu0 %v1037
    %1085 = vmatprep.subr.mxu0 0.0
    %1086 = vmatpush1.msra.mxu0 %v1038
    %1087 = vmatprep.subr.mxu0 0.0
    %1088 = vmatpush1.msra.mxu0 %v1039
    %1089 = vmatprep.subr.mxu0 0.0
    %1090 = vmatpush1.msra.mxu0 %v1040
    %1091 = vmatprep.subr.mxu0 0.0
    %1092 = vmatpush1.msra.mxu0 %v1041
    %1093 = vmatprep.subr.mxu0 0.0
    %1094 = vmatpush1.msra.mxu0 %v1042
    %1095 = vmatprep.subr.mxu0 0.0
    %1096 = vmatpush1.msra.mxu0 %v1043
    %1097 = vmatprep.subr.mxu0 0.0
    %1098 = vmatpush1.msra.mxu0 %v1044
    %1099 = vmatprep.subr.mxu0 0.0
    %1100 = vmatpush1.msra.mxu0 %v1045
    %1101 = vmatprep.subr.mxu0 0.0
    %1102 = vmatpush1.msra.mxu0 %v1046
    %1103 = vmatprep.subr.mxu0 0.0
    %1104 = vmatpush1.msra.mxu0 %v1047
    %1105 = vmatprep.subr.mxu0 0.0
    %1106 = vmatpush1.msra.mxu0 0.0
    %1107 = vmatprep.subr.mxu0 0.0
    %1108 = vmatpush1.msra.mxu0 0.0
    %1109 = vmatprep.subr.mxu0 0.0
    %1110 = vmatpush1.msra.mxu0 0.0
    %1111 = vmatprep.subr.mxu0 0.0
    %1112 = vmatpush1.msra.mxu0 0.0
    %1113 = vmatprep.subr.mxu0 0.0
    %1114 = vmatpush1.msra.mxu0 0.0
    %1115 = vmatprep.subr.mxu0 0.0
    %1116 = vmatpush1.msra.mxu0 0.0
    %1117 = vmatprep.subr.mxu0 0.0
    %1118 = vmatpush1.msra.mxu0 0.0
    %1119 = vmatprep.subr.mxu0 0.0
    %1120 = vmatpush1.msra.mxu0 0.0
    %1121 = vmatprep.subr.mxu0 0.0
    %1122 = vmatpush1.msra.mxu0 0.0
    %1123 = vmatprep.subr.mxu0 0.0
    %1124 = vmatpush1.msra.mxu0 0.0
    %1125 = vmatprep.subr.mxu0 0.0
    %1126 = vmatpush1.msra.mxu0 0.0
    %1127 = vmatprep.subr.mxu0 0.0
    %1128 = vmatpush1.msra.mxu0 0.0
    %1129 = vmatprep.subr.mxu0 0.0
    %1130 = vmatpush1.msra.mxu0 0.0
    %1131 = vmatprep.subr.mxu0 0.0
    %1132 = vmatpush1.msra.mxu0 0.0
    %1133 = vmatprep.subr.mxu0 0.0
    %1134 = vmatpush1.msra.mxu0 0.0
    %1135 = vmatprep.subr.mxu0 0.0
    %1136 = vmatpush1.msra.mxu0 0.0
    %1137 = vmatprep.mubr.f32.mxu0 0.0
    %1138 = vmatmul.mubr.f32.gmra.mrb[0].mxu0 %v1029
    %v1139 = vpop.f32.mrb[0].mxu0
    %v1140 = vadd.f32 %v1071, %v1139
    %v1141 = vpop.f32.mrb[0].mxu0
    %1142 = vmatprep.mubr.f32.mxu0 0.0
    %1143 = vmatmul.mubr.f32.gmra.mrb[0].mxu0 %v1030
    %v1144 = vpop.f32.mrb[0].mxu0
    %v1145 = vadd.f32 %v1071, %v1144
    %v1146 = vpop.f32.mrb[0].mxu0
    %1147 = vdwg.mxu0
    %1148 = vmatprep.subr.mxu0 0.0
    %1149 = vmatpush1.msra.mxu0 %v1049
    %1150 = vmatprep.subr.mxu0 0.0
    %1151 = vmatpush1.msra.mxu0 %v1050
    %1152 = vmatprep.subr.mxu0 0.0
    %1153 = vmatpush1.msra.mxu0 %v1051
    %1154 = vmatprep.subr.mxu0 0.0
    %1155 = vmatpush1.msra.mxu0 %v1052
    %1156 = vmatprep.subr.mxu0 0.0
    %1157 = vmatpush1.msra.mxu0 %v1053
    %1158 = vmatprep.subr.mxu0 0.0
    %1159 = vmatpush1.msra.mxu0 %v1054
    %1160 = vmatprep.subr.mxu0 0.0
    %1161 = vmatpush1.msra.mxu0 %v1055
    %1162 = vmatprep.subr.mxu0 0.0
    %1163 = vmatpush1.msra.mxu0 %v1056
    %1164 = vmatprep.subr.mxu0 0.0
    %1165 = vmatpush1.msra.mxu0 %v1057
    %1166 = vmatprep.subr.mxu0 0.0
    %1167 = vmatpush1.msra.mxu0 %v1058
    %1168 = vmatprep.subr.mxu0 0.0
    %1169 = vmatpush1.msra.mxu0 %v1059
    %1170 = vmatprep.subr.mxu0 0.0
    %1171 = vmatpush1.msra.mxu0 %v1060
    %1172 = vmatprep.subr.mxu0 0.0
    %1173 = vmatpush1.msra.mxu0 %v1061
    %1174 = vmatprep.subr.mxu0 0.0
    %1175 = vmatpush1.msra.mxu0 %v1062
    %1176 = vmatprep.subr.mxu0 0.0
    %1177 = vmatpush1.msra.mxu0 %v1063
    %1178 = vmatprep.subr.mxu0 0.0
    %1179 = vmatpush1.msra.mxu0 %v1064
    %1180 = vmatprep.subr.mxu0 0.0
    %1181 = vmatpush1.msra.mxu0 0.0
    %1182 = vmatprep.subr.mxu0 0.0
    %1183 = vmatpush1.msra.mxu0 0.0
    %1184 = vmatprep.subr.mxu0 0.0
    %1185 = vmatpush1.msra.mxu0 0.0
    %1186 = vmatprep.subr.mxu0 0.0
    %1187 = vmatpush1.msra.mxu0 0.0
    %1188 = vmatprep.subr.mxu0 0.0
    %1189 = vmatpush1.msra.mxu0 0.0
    %1190 = vmatprep.subr.mxu0 0.0
    %1191 = vmatpush1.msra.mxu0 0.0
    %1192 = vmatprep.subr.mxu0 0.0
    %1193 = vmatpush1.msra.mxu0 0.0
    %1194 = vmatprep.subr.mxu0 0.0
    %1195 = vmatpush1.msra.mxu0 0.0
    %1196 = vmatprep.subr.mxu0 0.0
    %1197 = vmatpush1.msra.mxu0 0.0
    %1198 = vmatprep.subr.mxu0 0.0
    %1199 = vmatpush1.msra.mxu0 0.0
    %1200 = vmatprep.subr.mxu0 0.0
    %1201 = vmatpush1.msra.mxu0 0.0
    %1202 = vmatprep.subr.mxu0 0.0
    %1203 = vmatpush1.msra.mxu0 0.0
    %1204 = vmatprep.subr.mxu0 0.0
    %1205 = vmatpush1.msra.mxu0 0.0
    %1206 = vmatprep.subr.mxu0 0.0
    %1207 = vmatpush1.msra.mxu0 0.0
    %1208 = vmatprep.subr.mxu0 0.0
    %1209 = vmatpush1.msra.mxu0 0.0
    %1210 = vmatprep.subr.mxu0 0.0
    %1211 = vmatpush1.msra.mxu0 0.0
    %1212 = vmatprep.mubr.f32.mxu0 0.0
    %1213 = vmatmul.mubr.f32.gmra.mrb[0].mxu0 %v73
    %v1214 = vpop.f32.mrb[0].mxu0
    %v1215 = vadd.f32 0.0, %v1214
    %v1216 = vpop.f32.mrb[0].mxu0
    %1217 = vdwg.mxu0
    %v1218 = vadd.f32 %v1140, %v1215
    %v1219 = vtanh.pop %v1218
    %v1220 = vxor.u32 %v1218, 2147483648
    %v1221 = vmul.f32 %v1220, 1.442695
    %v1222 = vpow.pop %v1221
    %v1223 = vadd.f32 %v1222, 1.0
    %v1224 = vrcp.pop %v1223
    %v1225 = vmul.f32 1.0, %v1224
    %v1226 = vsel %vm72, %v1219, %v1225
    %1227 = vrot.lane.b32.xlu0 %v1226, 64
    %v1228 = vpop.permute.xlu0 %1227
    %v1229 = vmul.f32 %v1226, %v1228
    %v1230 = vmul.f32 %v1226, %v74
    %1231 = vrot.lane.b32.xlu0 %v1229, 32
    %v1232 = vpop.permute.xlu0 %1231
    %v1233 = vadd.f32 %v1230, %v1232
    %v1234 = vtanh.pop %v1233
    %v1235 = vmul.f32 %v1234, %v1228
    %1236 = vst [vmem:[#allocation8] sm:$0x3] %v1235
    %1237 = vmatprep.subr.mxu0 0.0
    %1238 = vmatpush1.msra.mxu0 %v1049
    %1239 = vmatprep.subr.mxu0 0.0
    %1240 = vmatpush1.msra.mxu0 %v1050
    %1241 = vmatprep.subr.mxu0 0.0
    %1242 = vmatpush1.msra.mxu0 %v1051
    %1243 = vmatprep.subr.mxu0 0.0
    %1244 = vmatpush1.msra.mxu0 %v1052
    %1245 = vmatprep.subr.mxu0 0.0
    %1246 = vmatpush1.msra.mxu0 %v1053
    %1247 = vmatprep.subr.mxu0 0.0
    %1248 = vmatpush1.msra.mxu0 %v1054
    %1249 = vmatprep.subr.mxu0 0.0
    %1250 = vmatpush1.msra.mxu0 %v1055
    %1251 = vmatprep.subr.mxu0 0.0
    %1252 = vmatpush1.msra.mxu0 %v1056
    %1253 = vmatprep.subr.mxu0 0.0
    %1254 = vmatpush1.msra.mxu0 %v1057
    %1255 = vmatprep.subr.mxu0 0.0
    %1256 = vmatpush1.msra.mxu0 %v1058
    %1257 = vmatprep.subr.mxu0 0.0
    %1258 = vmatpush1.msra.mxu0 %v1059
    %1259 = vmatprep.subr.mxu0 0.0
    %1260 = vmatpush1.msra.mxu0 %v1060
    %1261 = vmatprep.subr.mxu0 0.0
    %1262 = vmatpush1.msra.mxu0 %v1061
    %1263 = vmatprep.subr.mxu0 0.0
    %1264 = vmatpush1.msra.mxu0 %v1062
    %1265 = vmatprep.subr.mxu0 0.0
    %1266 = vmatpush1.msra.mxu0 %v1063
    %1267 = vmatprep.subr.mxu0 0.0
    %1268 = vmatpush1.msra.mxu0 %v1064
    %1269 = vmatprep.subr.mxu0 0.0
    %1270 = vmatpush1.msra.mxu0 0.0
    %1271 = vmatprep.subr.mxu0 0.0
    %1272 = vmatpush1.msra.mxu0 0.0
    %1273 = vmatprep.subr.mxu0 0.0
    %1274 = vmatpush1.msra.mxu0 0.0
    %1275 = vmatprep.subr.mxu0 0.0
    %1276 = vmatpush1.msra.mxu0 0.0
    %1277 = vmatprep.subr.mxu0 0.0
    %1278 = vmatpush1.msra.mxu0 0.0
    %1279 = vmatprep.subr.mxu0 0.0
    %1280 = vmatpush1.msra.mxu0 0.0
    %1281 = vmatprep.subr.mxu0 0.0
    %1282 = vmatpush1.msra.mxu0 0.0
    %1283 = vmatprep.subr.mxu0 0.0
    %1284 = vmatpush1.msra.mxu0 0.0
    %1285 = vmatprep.subr.mxu0 0.0
    %1286 = vmatpush1.msra.mxu0 0.0
    %1287 = vmatprep.subr.mxu0 0.0
    %1288 = vmatpush1.msra.mxu0 0.0
    %1289 = vmatprep.subr.mxu0 0.0
    %1290 = vmatpush1.msra.mxu0 0.0
    %1291 = vmatprep.subr.mxu0 0.0
    %1292 = vmatpush1.msra.mxu0 0.0
    %1293 = vmatprep.subr.mxu0 0.0
    %1294 = vmatpush1.msra.mxu0 0.0
    %1295 = vmatprep.subr.mxu0 0.0
    %1296 = vmatpush1.msra.mxu0 0.0
    %1297 = vmatprep.subr.mxu0 0.0
    %1298 = vmatpush1.msra.mxu0 0.0
    %1299 = vmatprep.subr.mxu0 0.0
    %1300 = vmatpush1.msra.mxu0 0.0
    %1301 = vmatprep.mubr.f32.mxu0 0.0
    %1302 = vmatmul.mubr.f32.gmra.mrb[0].mxu0 %v1235
    %v1303 = vpop.f32.mrb[0].mxu0
    %v1304 = vadd.f32 0.0, %v1303
    %v1305 = vpop.f32.mrb[0].mxu0
    %1306 = vdwg.mxu0
    %v1308 = vrot.slane %v1304, 6
    %v1310 = vadd.f32 %v1140, %v1308
    %v1311 = vtanh.pop %v1310
    %v1312 = vxor.u32 %v1310, 2147483648
    %v1313 = vmul.f32 %v1312, 1.442695
    %v1314 = vpow.pop %v1313
    %v1315 = vadd.f32 %v1314, 1.0
    %v1316 = vrcp.pop %v1315
    %v1317 = vmul.f32 1.0, %v1316
    %v1318 = vsel %vm72, %v1311, %v1317
    %v1320 = vrot.slane %v1318, 2
    %1322 = vrot.lane.b32.xlu0 %v1320, 64
    %v1323 = vpop.permute.xlu0 %1322
    %v1325 = vrot.slane %v1323, 6
    %v1327 = vmul.f32 %v1318, %v1325
    %v1329 = vrot.slane %v1233, 6
    %v1331 = vmul.f32 %v1318, %v1329
    %v1333 = vrot.slane %v1327, 2
    %1335 = vrot.lane.b32.xlu0 %v1333, 32
    %v1336 = vpop.permute.xlu0 %1335
    %v1338 = vrot.slane %v1336, 6
    %v1340 = vadd.f32 %v1331, %v1338
    %v1341 = vtanh.pop %v1340
    %v1342 = vmul.f32 %v1341, %v1325
    %1343 = vst [vmem:[#allocation8] sm:$0xc] %v1342
    %v1345 = vrot.slane %v1342, 2
    %1347 = vmatprep.subr.mxu0 0.0
    %1348 = vmatpush1.msra.mxu0 %v1049
    %1349 = vmatprep.subr.mxu0 0.0
    %1350 = vmatpush1.msra.mxu0 %v1050
    %1351 = vmatprep.subr.mxu0 0.0
    %1352 = vmatpush1.msra.mxu0 %v1051
    %1353 = vmatprep.subr.mxu0 0.0
    %1354 = vmatpush1.msra.mxu0 %v1052
    %1355 = vmatprep.subr.mxu0 0.0
    %1356 = vmatpush1.msra.mxu0 %v1053
    %1357 = vmatprep.subr.mxu0 0.0
    %1358 = vmatpush1.msra.mxu0 %v1054
    %1359 = vmatprep.subr.mxu0 0.0
    %1360 = vmatpush1.msra.mxu0 %v1055
    %1361 = vmatprep.subr.mxu0 0.0
    %1362 = vmatpush1.msra.mxu0 %v1056
    %1363 = vmatprep.subr.mxu0 0.0
    %1364 = vmatpush1.msra.mxu0 %v1057
    %1365 = vmatprep.subr.mxu0 0.0
    %1366 = vmatpush1.msra.mxu0 %v1058
    %1367 = vmatprep.subr.mxu0 0.0
    %1368 = vmatpush1.msra.mxu0 %v1059
    %1369 = vmatprep.subr.mxu0 0.0
    %1370 = vmatpush1.msra.mxu0 %v1060
    %1371 = vmatprep.subr.mxu0 0.0
    %1372 = vmatpush1.msra.mxu0 %v1061
    %1373 = vmatprep.subr.mxu0 0.0
    %1374 = vmatpush1.msra.mxu0 %v1062
    %1375 = vmatprep.subr.mxu0 0.0
    %1376 = vmatpush1.msra.mxu0 %v1063
    %1377 = vmatprep.subr.mxu0 0.0
    %1378 = vmatpush1.msra.mxu0 %v1064
    %1379 = vmatprep.subr.mxu0 0.0
    %1380 = vmatpush1.msra.mxu0 0.0
    %1381 = vmatprep.subr.mxu0 0.0
    %1382 = vmatpush1.msra.mxu0 0.0
    %1383 = vmatprep.subr.mxu0 0.0
    %1384 = vmatpush1.msra.mxu0 0.0
    %1385 = vmatprep.subr.mxu0 0.0
    %1386 = vmatpush1.msra.mxu0 0.0
    %1387 = vmatprep.subr.mxu0 0.0
    %1388 = vmatpush1.msra.mxu0 0.0
    %1389 = vmatprep.subr.mxu0 0.0
    %1390 = vmatpush1.msra.mxu0 0.0
    %1391 = vmatprep.subr.mxu0 0.0
    %1392 = vmatpush1.msra.mxu0 0.0
    %1393 = vmatprep.subr.mxu0 0.0
    %1394 = vmatpush1.msra.mxu0 0.0
    %1395 = vmatprep.subr.mxu0 0.0
    %1396 = vmatpush1.msra.mxu0 0.0
    %1397 = vmatprep.subr.mxu0 0.0
    %1398 = vmatpush1.msra.mxu0 0.0
    %1399 = vmatprep.subr.mxu0 0.0
    %1400 = vmatpush1.msra.mxu0 0.0
    %1401 = vmatprep.subr.mxu0 0.0
    %1402 = vmatpush1.msra.mxu0 0.0
    %1403 = vmatprep.subr.mxu0 0.0
    %1404 = vmatpush1.msra.mxu0 0.0
    %1405 = vmatprep.subr.mxu0 0.0
    %1406 = vmatpush1.msra.mxu0 0.0
    %1407 = vmatprep.subr.mxu0 0.0
    %1408 = vmatpush1.msra.mxu0 0.0
    %1409 = vmatprep.subr.mxu0 0.0
    %1410 = vmatpush1.msra.mxu0 0.0
    %1411 = vmatprep.mubr.f32.mxu0 0.0
    %1412 = vmatmul.mubr.f32.gmra.mrb[0].mxu0 %v1345
    %v1413 = vpop.f32.mrb[0].mxu0
    %v1414 = vadd.f32 0.0, %v1413
    %v1415 = vpop.f32.mrb[0].mxu0
    %1416 = vdwg.mxu0
    %v1418 = vrot.slane %v1414, 4
    %v1420 = vadd.f32 %v1140, %v1418
    %v1421 = vtanh.pop %v1420
    %v1422 = vxor.u32 %v1420, 2147483648
    %v1423 = vmul.f32 %v1422, 1.442695
    %v1424 = vpow.pop %v1423
    %v1425 = vadd.f32 %v1424, 1.0
    %v1426 = vrcp.pop %v1425
    %v1427 = vmul.f32 1.0, %v1426
    %v1428 = vsel %vm72, %v1421, %v1427
    %v1430 = vrot.slane %v1428, 4
    %1432 = vrot.lane.b32.xlu0 %v1430, 64
    %v1433 = vpop.permute.xlu0 %1432
    %v1435 = vrot.slane %v1433, 4
    %v1437 = vmul.f32 %v1428, %v1435
    %v1439 = vrot.slane %v1340, 6
    %v1441 = vmul.f32 %v1428, %v1439
    %v1443 = vrot.slane %v1437, 4
    %1445 = vrot.lane.b32.xlu0 %v1443, 32
    %v1446 = vpop.permute.xlu0 %1445
    %v1448 = vrot.slane %v1446, 4
    %v1450 = vadd.f32 %v1441, %v1448
    %v1451 = vtanh.pop %v1450
    %v1452 = vmul.f32 %v1451, %v1435
    %1453 = vst [vmem:[#allocation8] sm:$0x30] %v1452
    %v1455 = vrot.slane %v1452, 4
    %1457 = vmatprep.subr.mxu0 0.0
    %1458 = vmatpush1.msra.mxu0 %v1049
    %1459 = vmatprep.subr.mxu0 0.0
    %1460 = vmatpush1.msra.mxu0 %v1050
    %1461 = vmatprep.subr.mxu0 0.0
    %1462 = vmatpush1.msra.mxu0 %v1051
    %1463 = vmatprep.subr.mxu0 0.0
    %1464 = vmatpush1.msra.mxu0 %v1052
    %1465 = vmatprep.subr.mxu0 0.0
    %1466 = vmatpush1.msra.mxu0 %v1053
    %1467 = vmatprep.subr.mxu0 0.0
    %1468 = vmatpush1.msra.mxu0 %v1054
    %1469 = vmatprep.subr.mxu0 0.0
    %1470 = vmatpush1.msra.mxu0 %v1055
    %1471 = vmatprep.subr.mxu0 0.0
    %1472 = vmatpush1.msra.mxu0 %v1056
    %1473 = vmatprep.subr.mxu0 0.0
    %1474 = vmatpush1.msra.mxu0 %v1057
    %1475 = vmatprep.subr.mxu0 0.0
    %1476 = vmatpush1.msra.mxu0 %v1058
    %1477 = vmatprep.subr.mxu0 0.0
    %1478 = vmatpush1.msra.mxu0 %v1059
    %1479 = vmatprep.subr.mxu0 0.0
    %1480 = vmatpush1.msra.mxu0 %v1060
    %1481 = vmatprep.subr.mxu0 0.0
    %1482 = vmatpush1.msra.mxu0 %v1061
    %1483 = vmatprep.subr.mxu0 0.0
    %1484 = vmatpush1.msra.mxu0 %v1062
    %1485 = vmatprep.subr.mxu0 0.0
    %1486 = vmatpush1.msra.mxu0 %v1063
    %1487 = vmatprep.subr.mxu0 0.0
    %1488 = vmatpush1.msra.mxu0 %v1064
    %1489 = vmatprep.subr.mxu0 0.0
    %1490 = vmatpush1.msra.mxu0 0.0
    %1491 = vmatprep.subr.mxu0 0.0
    %1492 = vmatpush1.msra.mxu0 0.0
    %1493 = vmatprep.subr.mxu0 0.0
    %1494 = vmatpush1.msra.mxu0 0.0
    %1495 = vmatprep.subr.mxu0 0.0
    %1496 = vmatpush1.msra.mxu0 0.0
    %1497 = vmatprep.subr.mxu0 0.0
    %1498 = vmatpush1.msra.mxu0 0.0
    %1499 = vmatprep.subr.mxu0 0.0
    %1500 = vmatpush1.msra.mxu0 0.0
    %1501 = vmatprep.subr.mxu0 0.0
    %1502 = vmatpush1.msra.mxu0 0.0
    %1503 = vmatprep.subr.mxu0 0.0
    %1504 = vmatpush1.msra.mxu0 0.0
    %1505 = vmatprep.subr.mxu0 0.0
    %1506 = vmatpush1.msra.mxu0 0.0
    %1507 = vmatprep.subr.mxu0 0.0
    %1508 = vmatpush1.msra.mxu0 0.0
    %1509 = vmatprep.subr.mxu0 0.0
    %1510 = vmatpush1.msra.mxu0 0.0
    %1511 = vmatprep.subr.mxu0 0.0
    %1512 = vmatpush1.msra.mxu0 0.0
    %1513 = vmatprep.subr.mxu0 0.0
    %1514 = vmatpush1.msra.mxu0 0.0
    %1515 = vmatprep.subr.mxu0 0.0
    %1516 = vmatpush1.msra.mxu0 0.0
    %1517 = vmatprep.subr.mxu0 0.0
    %1518 = vmatpush1.msra.mxu0 0.0
    %1519 = vmatprep.subr.mxu0 0.0
    %1520 = vmatpush1.msra.mxu0 0.0
    %1521 = vmatprep.mubr.f32.mxu0 0.0
    %1522 = vmatmul.mubr.f32.gmra.mrb[0].mxu0 %v1455
    %v1523 = vpop.f32.mrb[0].mxu0
    %v1524 = vadd.f32 0.0, %v1523
    %v1525 = vpop.f32.mrb[0].mxu0
    %1526 = vdwg.mxu0
    %v1528 = vrot.slane %v1524, 2
    %v1530 = vadd.f32 %v1140, %v1528
    %v1531 = vtanh.pop %v1530
    %v1532 = vxor.u32 %v1530, 2147483648
    %v1533 = vmul.f32 %v1532, 1.442695
    %v1534 = vpow.pop %v1533
    %v1535 = vadd.f32 %v1534, 1.0
    %v1536 = vrcp.pop %v1535
    %v1537 = vmul.f32 1.0, %v1536
    %v1538 = vsel %vm72, %v1531, %v1537
    %v1540 = vrot.slane %v1538, 6
    %1542 = vrot.lane.b32.xlu0 %v1540, 64
    %v1543 = vpop.permute.xlu0 %1542
    %v1545 = vrot.slane %v1543, 2
    %v1547 = vmul.f32 %v1538, %v1545
    %v1549 = vrot.slane %v1450, 6
    %v1551 = vmul.f32 %v1538, %v1549
    %v1553 = vrot.slane %v1547, 6
    %1555 = vrot.lane.b32.xlu0 %v1553, 32
    %v1556 = vpop.permute.xlu0 %1555
    %v1558 = vrot.slane %v1556, 2
    %v1560 = vadd.f32 %v1551, %v1558
    %v1561 = vtanh.pop %v1560
    %v1562 = vmul.f32 %v1561, %v1545
    %1563 = vst [vmem:[#allocation8] sm:$0xc0] %v1562
    %v1565 = vrot.slane %v1562, 6
    %1567 = vmatprep.subr.mxu0 0.0
    %1568 = vmatpush1.msra.mxu0 %v1049
    %1569 = vmatprep.subr.mxu0 0.0
    %1570 = vmatpush1.msra.mxu0 %v1050
    %1571 = vmatprep.subr.mxu0 0.0
    %1572 = vmatpush1.msra.mxu0 %v1051
    %1573 = vmatprep.subr.mxu0 0.0
    %1574 = vmatpush1.msra.mxu0 %v1052
    %1575 = vmatprep.subr.mxu0 0.0
    %1576 = vmatpush1.msra.mxu0 %v1053
    %1577 = vmatprep.subr.mxu0 0.0
    %1578 = vmatpush1.msra.mxu0 %v1054
    %1579 = vmatprep.subr.mxu0 0.0
    %1580 = vmatpush1.msra.mxu0 %v1055
    %1581 = vmatprep.subr.mxu0 0.0
    %1582 = vmatpush1.msra.mxu0 %v1056
    %1583 = vmatprep.subr.mxu0 0.0
    %1584 = vmatpush1.msra.mxu0 %v1057
    %1585 = vmatprep.subr.mxu0 0.0
    %1586 = vmatpush1.msra.mxu0 %v1058
    %1587 = vmatprep.subr.mxu0 0.0
    %1588 = vmatpush1.msra.mxu0 %v1059
    %1589 = vmatprep.subr.mxu0 0.0
    %1590 = vmatpush1.msra.mxu0 %v1060
    %1591 = vmatprep.subr.mxu0 0.0
    %1592 = vmatpush1.msra.mxu0 %v1061
    %1593 = vmatprep.subr.mxu0 0.0
    %1594 = vmatpush1.msra.mxu0 %v1062
    %1595 = vmatprep.subr.mxu0 0.0
    %1596 = vmatpush1.msra.mxu0 %v1063
    %1597 = vmatprep.subr.mxu0 0.0
    %1598 = vmatpush1.msra.mxu0 %v1064
    %1599 = vmatprep.subr.mxu0 0.0
    %1600 = vmatpush1.msra.mxu0 0.0
    %1601 = vmatprep.subr.mxu0 0.0
    %1602 = vmatpush1.msra.mxu0 0.0
    %1603 = vmatprep.subr.mxu0 0.0
    %1604 = vmatpush1.msra.mxu0 0.0
    %1605 = vmatprep.subr.mxu0 0.0
    %1606 = vmatpush1.msra.mxu0 0.0
    %1607 = vmatprep.subr.mxu0 0.0
    %1608 = vmatpush1.msra.mxu0 0.0
    %1609 = vmatprep.subr.mxu0 0.0
    %1610 = vmatpush1.msra.mxu0 0.0
    %1611 = vmatprep.subr.mxu0 0.0
    %1612 = vmatpush1.msra.mxu0 0.0
    %1613 = vmatprep.subr.mxu0 0.0
    %1614 = vmatpush1.msra.mxu0 0.0
    %1615 = vmatprep.subr.mxu0 0.0
    %1616 = vmatpush1.msra.mxu0 0.0
    %1617 = vmatprep.subr.mxu0 0.0
    %1618 = vmatpush1.msra.mxu0 0.0
    %1619 = vmatprep.subr.mxu0 0.0
    %1620 = vmatpush1.msra.mxu0 0.0
    %1621 = vmatprep.subr.mxu0 0.0
    %1622 = vmatpush1.msra.mxu0 0.0
    %1623 = vmatprep.subr.mxu0 0.0
    %1624 = vmatpush1.msra.mxu0 0.0
    %1625 = vmatprep.subr.mxu0 0.0
    %1626 = vmatpush1.msra.mxu0 0.0
    %1627 = vmatprep.subr.mxu0 0.0
    %1628 = vmatpush1.msra.mxu0 0.0
    %1629 = vmatprep.subr.mxu0 0.0
    %1630 = vmatpush1.msra.mxu0 0.0
    %1631 = vmatprep.mubr.f32.mxu0 0.0
    %1632 = vmatmul.mubr.f32.gmra.mrb[0].mxu0 %v1565
    %v1633 = vpop.f32.mrb[0].mxu0
    %v1634 = vadd.f32 0.0, %v1633
    %v1635 = vpop.f32.mrb[0].mxu0
    %1636 = vdwg.mxu0
    %v1637 = vadd.f32 %v1145, %v1634
    %v1638 = vtanh.pop %v1637
    %v1639 = vxor.u32 %v1637, 2147483648
    %v1640 = vmul.f32 %v1639, 1.442695
    %v1641 = vpow.pop %v1640
    %v1642 = vadd.f32 %v1641, 1.0
    %v1643 = vrcp.pop %v1642
    %v1644 = vmul.f32 1.0, %v1643
    %v1645 = vsel %vm72, %v1638, %v1644
    %1646 = vrot.lane.b32.xlu0 %v1645, 64
    %v1647 = vpop.permute.xlu0 %1646
    %v1648 = vmul.f32 %v1645, %v1647
    %v1650 = vrot.slane %v1560, 6
    %v1652 = vmul.f32 %v1645, %v1650
    %1653 = vrot.lane.b32.xlu0 %v1648, 32
    %v1654 = vpop.permute.xlu0 %1653
    %v1655 = vadd.f32 %v1652, %v1654
    %v1656 = vtanh.pop %v1655
    %v1657 = vmul.f32 %v1656, %v1647
    %1658 = vst [vmem:[#allocation8 + $0x8] sm:$0x3] %v1657
    %1659 = vmatprep.subr.mxu0 0.0
    %1660 = vmatpush1.msra.mxu0 %v1049
    %1661 = vmatprep.subr.mxu0 0.0
    %1662 = vmatpush1.msra.mxu0 %v1050
    %1663 = vmatprep.subr.mxu0 0.0
    %1664 = vmatpush1.msra.mxu0 %v1051
    %1665 = vmatprep.subr.mxu0 0.0
    %1666 = vmatpush1.msra.mxu0 %v1052
    %1667 = vmatprep.subr.mxu0 0.0
    %1668 = vmatpush1.msra.mxu0 %v1053
    %1669 = vmatprep.subr.mxu0 0.0
    %1670 = vmatpush1.msra.mxu0 %v1054
    %1671 = vmatprep.subr.mxu0 0.0
    %1672 = vmatpush1.msra.mxu0 %v1055
    %1673 = vmatprep.subr.mxu0 0.0
    %1674 = vmatpush1.msra.mxu0 %v1056
    %1675 = vmatprep.subr.mxu0 0.0
    %1676 = vmatpush1.msra.mxu0 %v1057
    %1677 = vmatprep.subr.mxu0 0.0
    %1678 = vmatpush1.msra.mxu0 %v1058
    %1679 = vmatprep.subr.mxu0 0.0
    %1680 = vmatpush1.msra.mxu0 %v1059
    %1681 = vmatprep.subr.mxu0 0.0
    %1682 = vmatpush1.msra.mxu0 %v1060
    %1683 = vmatprep.subr.mxu0 0.0
    %1684 = vmatpush1.msra.mxu0 %v1061
    %1685 = vmatprep.subr.mxu0 0.0
    %1686 = vmatpush1.msra.mxu0 %v1062
    %1687 = vmatprep.subr.mxu0 0.0
    %1688 = vmatpush1.msra.mxu0 %v1063
    %1689 = vmatprep.subr.mxu0 0.0
    %1690 = vmatpush1.msra.mxu0 %v1064
    %1691 = vmatprep.subr.mxu0 0.0
    %1692 = vmatpush1.msra.mxu0 0.0
    %1693 = vmatprep.subr.mxu0 0.0
    %1694 = vmatpush1.msra.mxu0 0.0
    %1695 = vmatprep.subr.mxu0 0.0
    %1696 = vmatpush1.msra.mxu0 0.0
    %1697 = vmatprep.subr.mxu0 0.0
    %1698 = vmatpush1.msra.mxu0 0.0
    %1699 = vmatprep.subr.mxu0 0.0
    %1700 = vmatpush1.msra.mxu0 0.0
    %1701 = vmatprep.subr.mxu0 0.0
    %1702 = vmatpush1.msra.mxu0 0.0
    %1703 = vmatprep.subr.mxu0 0.0
    %1704 = vmatpush1.msra.mxu0 0.0
    %1705 = vmatprep.subr.mxu0 0.0
    %1706 = vmatpush1.msra.mxu0 0.0
    %1707 = vmatprep.subr.mxu0 0.0
    %1708 = vmatpush1.msra.mxu0 0.0
    %1709 = vmatprep.subr.mxu0 0.0
    %1710 = vmatpush1.msra.mxu0 0.0
    %1711 = vmatprep.subr.mxu0 0.0
    %1712 = vmatpush1.msra.mxu0 0.0
    %1713 = vmatprep.subr.mxu0 0.0
    %1714 = vmatpush1.msra.mxu0 0.0
    %1715 = vmatprep.subr.mxu0 0.0
    %1716 = vmatpush1.msra.mxu0 0.0
    %1717 = vmatprep.subr.mxu0 0.0
    %1718 = vmatpush1.msra.mxu0 0.0
    %1719 = vmatprep.subr.mxu0 0.0
    %1720 = vmatpush1.msra.mxu0 0.0
    %1721 = vmatprep.subr.mxu0 0.0
    %1722 = vmatpush1.msra.mxu0 0.0
    %1723 = vmatprep.mubr.f32.mxu0 0.0
    %1724 = vmatmul.mubr.f32.gmra.mrb[0].mxu0 %v1657
    %v1725 = vpop.f32.mrb[0].mxu0
    %v1726 = vadd.f32 0.0, %v1725
    %v1727 = vpop.f32.mrb[0].mxu0
    %1728 = vdwg.mxu0
    %v1730 = vrot.slane %v1726, 6
    %v1732 = vadd.f32 %v1145, %v1730
    %v1733 = vtanh.pop %v1732
    %v1734 = vxor.u32 %v1732, 2147483648
    %v1735 = vmul.f32 %v1734, 1.442695
    %v1736 = vpow.pop %v1735
    %v1737 = vadd.f32 %v1736, 1.0
    %v1738 = vrcp.pop %v1737
    %v1739 = vmul.f32 1.0, %v1738
    %v1740 = vsel %vm72, %v1733, %v1739
    %v1742 = vrot.slane %v1740, 2
    %1744 = vrot.lane.b32.xlu0 %v1742, 64
    %v1745 = vpop.permute.xlu0 %1744
    %v1747 = vrot.slane %v1745, 6
    %v1749 = vmul.f32 %v1740, %v1747
    %v1751 = vrot.slane %v1655, 6
    %v1753 = vmul.f32 %v1740, %v1751
    %v1755 = vrot.slane %v1749, 2
    %1757 = vrot.lane.b32.xlu0 %v1755, 32
    %v1758 = vpop.permute.xlu0 %1757
    %v1760 = vrot.slane %v1758, 6
    %v1762 = vadd.f32 %v1753, %v1760
    %v1763 = vtanh.pop %v1762
    %v1764 = vmul.f32 %v1763, %v1747
    %1765 = vst [vmem:[#allocation8 + $0x8] sm:$0xc] %v1764
    %v1767 = vrot.slane %v1764, 2
    %1769 = vmatprep.subr.mxu0 0.0
    %1770 = vmatpush1.msra.mxu0 %v1049
    %1771 = vmatprep.subr.mxu0 0.0
    %1772 = vmatpush1.msra.mxu0 %v1050
    %1773 = vmatprep.subr.mxu0 0.0
    %1774 = vmatpush1.msra.mxu0 %v1051
    %1775 = vmatprep.subr.mxu0 0.0
    %1776 = vmatpush1.msra.mxu0 %v1052
    %1777 = vmatprep.subr.mxu0 0.0
    %1778 = vmatpush1.msra.mxu0 %v1053
    %1779 = vmatprep.subr.mxu0 0.0
    %1780 = vmatpush1.msra.mxu0 %v1054
    %1781 = vmatprep.subr.mxu0 0.0
    %1782 = vmatpush1.msra.mxu0 %v1055
    %1783 = vmatprep.subr.mxu0 0.0
    %1784 = vmatpush1.msra.mxu0 %v1056
    %1785 = vmatprep.subr.mxu0 0.0
    %1786 = vmatpush1.msra.mxu0 %v1057
    %1787 = vmatprep.subr.mxu0 0.0
    %1788 = vmatpush1.msra.mxu0 %v1058
    %1789 = vmatprep.subr.mxu0 0.0
    %1790 = vmatpush1.msra.mxu0 %v1059
    %1791 = vmatprep.subr.mxu0 0.0
    %1792 = vmatpush1.msra.mxu0 %v1060
    %1793 = vmatprep.subr.mxu0 0.0
    %1794 = vmatpush1.msra.mxu0 %v1061
    %1795 = vmatprep.subr.mxu0 0.0
    %1796 = vmatpush1.msra.mxu0 %v1062
    %1797 = vmatprep.subr.mxu0 0.0
    %1798 = vmatpush1.msra.mxu0 %v1063
    %1799 = vmatprep.subr.mxu0 0.0
    %1800 = vmatpush1.msra.mxu0 %v1064
    %1801 = vmatprep.subr.mxu0 0.0
    %1802 = vmatpush1.msra.mxu0 0.0
    %1803 = vmatprep.subr.mxu0 0.0
    %1804 = vmatpush1.msra.mxu0 0.0
    %1805 = vmatprep.subr.mxu0 0.0
    %1806 = vmatpush1.msra.mxu0 0.0
    %1807 = vmatprep.subr.mxu0 0.0
    %1808 = vmatpush1.msra.mxu0 0.0
    %1809 = vmatprep.subr.mxu0 0.0
    %1810 = vmatpush1.msra.mxu0 0.0
    %1811 = vmatprep.subr.mxu0 0.0
    %1812 = vmatpush1.msra.mxu0 0.0
    %1813 = vmatprep.subr.mxu0 0.0
    %1814 = vmatpush1.msra.mxu0 0.0
    %1815 = vmatprep.subr.mxu0 0.0
    %1816 = vmatpush1.msra.mxu0 0.0
    %1817 = vmatprep.subr.mxu0 0.0
    %1818 = vmatpush1.msra.mxu0 0.0
    %1819 = vmatprep.subr.mxu0 0.0
    %1820 = vmatpush1.msra.mxu0 0.0
    %1821 = vmatprep.subr.mxu0 0.0
    %1822 = vmatpush1.msra.mxu0 0.0
    %1823 = vmatprep.subr.mxu0 0.0
    %1824 = vmatpush1.msra.mxu0 0.0
    %1825 = vmatprep.subr.mxu0 0.0
    %1826 = vmatpush1.msra.mxu0 0.0
    %1827 = vmatprep.subr.mxu0 0.0
    %1828 = vmatpush1.msra.mxu0 0.0
    %1829 = vmatprep.subr.mxu0 0.0
    %1830 = vmatpush1.msra.mxu0 0.0
    %1831 = vmatprep.subr.mxu0 0.0
    %1832 = vmatpush1.msra.mxu0 0.0
    %1833 = vmatprep.mubr.f32.mxu0 0.0
    %1834 = vmatmul.mubr.f32.gmra.mrb[0].mxu0 %v1767
    %v1835 = vpop.f32.mrb[0].mxu0
    %v1836 = vadd.f32 0.0, %v1835
    %v1837 = vpop.f32.mrb[0].mxu0
    %1838 = vdwg.mxu0
    %v1840 = vrot.slane %v1836, 4
    %v1842 = vadd.f32 %v1145, %v1840
    %v1843 = vtanh.pop %v1842
    %v1844 = vxor.u32 %v1842, 2147483648
    %v1845 = vmul.f32 %v1844, 1.442695
    %v1846 = vpow.pop %v1845
    %v1847 = vadd.f32 %v1846, 1.0
    %v1848 = vrcp.pop %v1847
    %v1849 = vmul.f32 1.0, %v1848
    %v1850 = vsel %vm72, %v1843, %v1849
    %v1852 = vrot.slane %v1850, 4
    %1854 = vrot.lane.b32.xlu0 %v1852, 64
    %v1855 = vpop.permute.xlu0 %1854
    %v1857 = vrot.slane %v1855, 4
    %v1859 = vmul.f32 %v1850, %v1857
    %v1861 = vrot.slane %v1762, 6
    %v1863 = vmul.f32 %v1850, %v1861
    %v1865 = vrot.slane %v1859, 4
    %1867 = vrot.lane.b32.xlu0 %v1865, 32
    %v1868 = vpop.permute.xlu0 %1867
    %v1870 = vrot.slane %v1868, 4
    %v1872 = vadd.f32 %v1863, %v1870
    %v1873 = vtanh.pop %v1872
    %v1874 = vmul.f32 %v1873, %v1857
    %1875 = vst [vmem:[#allocation8 + $0x8] sm:$0x30] %v1874
    %v1877 = vrot.slane %v1874, 4
    %1879 = vmatprep.subr.mxu0 0.0
    %1880 = vmatpush1.msra.mxu0 %v1049
    %1881 = vmatprep.subr.mxu0 0.0
    %1882 = vmatpush1.msra.mxu0 %v1050
    %1883 = vmatprep.subr.mxu0 0.0
    %1884 = vmatpush1.msra.mxu0 %v1051
    %1885 = vmatprep.subr.mxu0 0.0
    %1886 = vmatpush1.msra.mxu0 %v1052
    %1887 = vmatprep.subr.mxu0 0.0
    %1888 = vmatpush1.msra.mxu0 %v1053
    %1889 = vmatprep.subr.mxu0 0.0
    %1890 = vmatpush1.msra.mxu0 %v1054
    %1891 = vmatprep.subr.mxu0 0.0
    %1892 = vmatpush1.msra.mxu0 %v1055
    %1893 = vmatprep.subr.mxu0 0.0
    %1894 = vmatpush1.msra.mxu0 %v1056
    %1895 = vmatprep.subr.mxu0 0.0
    %1896 = vmatpush1.msra.mxu0 %v1057
    %1897 = vmatprep.subr.mxu0 0.0
    %1898 = vmatpush1.msra.mxu0 %v1058
    %1899 = vmatprep.subr.mxu0 0.0
    %1900 = vmatpush1.msra.mxu0 %v1059
    %1901 = vmatprep.subr.mxu0 0.0
    %1902 = vmatpush1.msra.mxu0 %v1060
    %1903 = vmatprep.subr.mxu0 0.0
    %1904 = vmatpush1.msra.mxu0 %v1061
    %1905 = vmatprep.subr.mxu0 0.0
    %1906 = vmatpush1.msra.mxu0 %v1062
    %1907 = vmatprep.subr.mxu0 0.0
    %1908 = vmatpush1.msra.mxu0 %v1063
    %1909 = vmatprep.subr.mxu0 0.0
    %1910 = vmatpush1.msra.mxu0 %v1064
    %1911 = vmatprep.subr.mxu0 0.0
    %1912 = vmatpush1.msra.mxu0 0.0
    %1913 = vmatprep.subr.mxu0 0.0
    %1914 = vmatpush1.msra.mxu0 0.0
    %1915 = vmatprep.subr.mxu0 0.0
    %1916 = vmatpush1.msra.mxu0 0.0
    %1917 = vmatprep.subr.mxu0 0.0
    %1918 = vmatpush1.msra.mxu0 0.0
    %1919 = vmatprep.subr.mxu0 0.0
    %1920 = vmatpush1.msra.mxu0 0.0
    %1921 = vmatprep.subr.mxu0 0.0
    %1922 = vmatpush1.msra.mxu0 0.0
    %1923 = vmatprep.subr.mxu0 0.0
    %1924 = vmatpush1.msra.mxu0 0.0
    %1925 = vmatprep.subr.mxu0 0.0
    %1926 = vmatpush1.msra.mxu0 0.0
    %1927 = vmatprep.subr.mxu0 0.0
    %1928 = vmatpush1.msra.mxu0 0.0
    %1929 = vmatprep.subr.mxu0 0.0
    %1930 = vmatpush1.msra.mxu0 0.0
    %1931 = vmatprep.subr.mxu0 0.0
    %1932 = vmatpush1.msra.mxu0 0.0
    %1933 = vmatprep.subr.mxu0 0.0
    %1934 = vmatpush1.msra.mxu0 0.0
    %1935 = vmatprep.subr.mxu0 0.0
    %1936 = vmatpush1.msra.mxu0 0.0
    %1937 = vmatprep.subr.mxu0 0.0
    %1938 = vmatpush1.msra.mxu0 0.0
    %1939 = vmatprep.subr.mxu0 0.0
    %1940 = vmatpush1.msra.mxu0 0.0
    %1941 = vmatprep.subr.mxu0 0.0
    %1942 = vmatpush1.msra.mxu0 0.0
    %1943 = vmatprep.mubr.f32.mxu0 0.0
    %1944 = vmatmul.mubr.f32.gmra.mrb[0].mxu0 %v1877
    %v1945 = vpop.f32.mrb[0].mxu0
    %v1946 = vadd.f32 0.0, %v1945
    %v1947 = vpop.f32.mrb[0].mxu0
    %1948 = vdwg.mxu0
    %v1950 = vrot.slane %v1946, 2
    %v1952 = vadd.f32 %v1145, %v1950
    %v1953 = vtanh.pop %v1952
    %v1954 = vxor.u32 %v1952, 2147483648
    %v1955 = vmul.f32 %v1954, 1.442695
    %v1956 = vpow.pop %v1955
    %v1957 = vadd.f32 %v1956, 1.0
    %v1958 = vrcp.pop %v1957
    %v1959 = vmul.f32 1.0, %v1958
    %v1960 = vsel %vm72, %v1953, %v1959
    %v1962 = vrot.slane %v1960, 6
    %1964 = vrot.lane.b32.xlu0 %v1962, 64
    %v1965 = vpop.permute.xlu0 %1964
    %v1967 = vrot.slane %v1965, 2
    %v1969 = vmul.f32 %v1960, %v1967
    %v1971 = vrot.slane %v1872, 6
    %v1973 = vmul.f32 %v1960, %v1971
    %v1975 = vrot.slane %v1969, 6
    %1977 = vrot.lane.b32.xlu0 %v1975, 32
    %v1978 = vpop.permute.xlu0 %1977
    %v1980 = vrot.slane %v1978, 2
    %v1982 = vadd.f32 %v1973, %v1980
    %v1983 = vtanh.pop %v1982
    %v1984 = vmul.f32 %v1983, %v1967
    %1985 = vst [vmem:[#allocation8 + $0x8] sm:$0xc0] %v1984
    %1986 = vst [vmem:[#allocation9 - $0x6] sm:$0xc0] %v1982
    // Predicated region
    $region38: #{tpu_custom_call.1} parent=1 // pred_check
      _
    $region39: #{tpu_custom_call.1} parent=1 // pred_check_branch
      %1988 = sbr.rel (0) target = $region41
    $region40: #{tpu_custom_call.1} parent=1 // pred_region
      %s1990 = ssub.s32 256, 256
      %1991 = vsyncadd [#allocation4], %s1990
      %s1992 = sshll.u32 [#allocation8], 4
      %s1993 = int_to_ptr.vmem [resolvable:$true] %s1992
      %1998 = dma.vmem_to_hbm [thread:$0]  %s1993, 256, %s6, [#allocation4], 128, 128, 8
    $region41: #{tpu_custom_call.1} parent=1 // pred_fallthru
      _
    // Predicated region
    $region42: #{tpu_custom_call.1} parent=1 // pred_check
      _
    $region43: #{tpu_custom_call.1} parent=1 // pred_check_branch
      %2000 = sbr.rel (0) target = $region45
    $region44: #{tpu_custom_call.1} parent=1 // pred_region
      %s2002 = ssub.s32 32, 32
      %2003 = vsyncadd [#allocation10], %s2002
      %s2005 = sshll.u32 [#allocation9], 4
      %s2006 = int_to_ptr.vmem [resolvable:$true] %s2005
      %2008 = dma.vmem_to_hbm [thread:$0]  %s2006, 32, %s7, [#allocation10]
    $region45: #{tpu_custom_call.1} parent=1 // pred_fallthru
      _
    // Predicated region
    $region46: #{tpu_custom_call.1} parent=1 // pred_check
      _
    $region47: #{tpu_custom_call.1} parent=1 // pred_check_branch
      %2010 = sbr.rel (0) target = $region49
    $region48: #{tpu_custom_call.1} parent=1 // pred_region
      %2011 = dma.done [#allocation4], 256
    $region49: #{tpu_custom_call.1} parent=1 // pred_fallthru
      _
    // Predicated region
    $region50: #{tpu_custom_call.1} parent=1 // pred_check
      _
    $region51: #{tpu_custom_call.1} parent=1 // pred_check_branch
      %2013 = sbr.rel (0) target = $region53
    $region52: #{tpu_custom_call.1} parent=1 // pred_region
      %2014 = dma.done [#allocation10], 32
    $region53: #{tpu_custom_call.1} parent=1 // pred_fallthru
      _
    %2015 = vsyncpa [#allocation3], 1
    %2016 = vsyncpa [#allocation6], 1
    %2017 = vsyncpa [#allocation4], 1
    %2018 = vsyncpa [#allocation10], 1

</llo_original>
